<compile_context>
chip_gen: v7x
topology: tpu7x:2x2x1
jax: 0.10.0
libtpu: 0.0.40
codegen_flags: <defaults>
</compile_context>

<pallas_src>
import functools
import math

import jax
import jax.numpy as jnp
from jax.experimental import pallas as pl
from jax.experimental.pallas import tpu as pltpu


def _layernorm(v, g, b, eps=1e-5):
    mu = jnp.mean(v, axis=-1, keepdims=True)
    var = jnp.mean((v - mu) ** 2, axis=-1, keepdims=True)
    return (v - mu) * jax.lax.rsqrt(var + eps) * g + b


def _gelu_tanh(v):
    # tanh approximation of GELU (matches TRT-LLM's gelu; EUP-friendly on TPU)
    return 0.5 * v * (1.0 + jnp.tanh(0.7978845608028654 * (v + 0.044715 * v * v * v)))


def _vmem_limit_bytes():
    # ~80% of physical VMEM, capped at 100 MiB.  v5e/v6e (128 MiB) -> 100 MiB;
    # v7x (64 MiB) -> ~51 MiB (per perf review: never request all of v7x VMEM).
    try:
        cap = int(pltpu.get_tpu_info().vmem_capacity_bytes)
        return int(min(100 * 1024 * 1024, int(cap * 0.8)))
    except Exception:
        return 64 * 1024 * 1024


def _const_spec(w):
    zeros = (0,) * w.ndim
    return pl.BlockSpec(w.shape, lambda *args, _z=zeros: _z)


# --------------------------------------------------------------------------
# Kernel 1: LN1 + QKV projection (grid over batch x sequence tiles).
# Three separate D-wide dots (lane-aligned weight slices), q pre-scaled.
# --------------------------------------------------------------------------
def _ln_qkv_kernel(x_ref, g_ref, b_ref,
                   wq_ref, bq_ref, wk_ref, bk_ref, wv_ref, bv_ref,
                   q_ref, k_ref, v_ref):
    x = x_ref[0]                                             # (TS, D) f32
    h = _layernorm(x, g_ref[...], b_ref[...]).astype(jnp.bfloat16)
    q_ref[0] = (jnp.dot(h, wq_ref[...], preferred_element_type=jnp.float32)
                + bq_ref[...]).astype(q_ref.dtype)
    k_ref[0] = (jnp.dot(h, wk_ref[...], preferred_element_type=jnp.float32)
                + bk_ref[...]).astype(k_ref.dtype)
    v_ref[0] = (jnp.dot(h, wv_ref[...], preferred_element_type=jnp.float32)
                + bv_ref[...]).astype(v_ref.dtype)


# --------------------------------------------------------------------------
# Kernel 2: attention with per-batch VMEM-resident K/V + fused epilogue
# (O-proj + residual + LN2 + MLP + residual), grid = (B, S/TQ).
# --------------------------------------------------------------------------
def _attn_mlp_kernel(x_ref, q_ref, k_ref, v_ref,
                     wo_ref, bo_ref, ln2_g_ref, ln2_b_ref,
                     w1_ref, b1_ref, w2_ref, b2_ref,
                     o_ref, ctx_ref, *, n_head, heads_per_group):
    D = x_ref.shape[-1]
    hd = D // n_head
    gw = heads_per_group * hd            # lane width of one head group (>=128)

    # Per-head attention against the full resident K/V of this batch row.
    # Heads are grouped so every ctx store is lane-dense (no masked 64-lane
    # RMWs) and there is no running max/sum scratch at all.
    for g in range(n_head // heads_per_group):
        parts = []
        for j in range(heads_per_group):
            lo = (g * heads_per_group + j) * hd
            q_h = q_ref[0, :, lo:lo + hd]                    # (TQ, hd) bf16, pre-scaled
            k_h = k_ref[0, :, lo:lo + hd]                    # (S,  hd) bf16
            v_h = v_ref[0, :, lo:lo + hd]                    # (S,  hd) bf16
            s = jax.lax.dot_general(q_h, k_h, (((1,), (1,)), ((), ())),
                                    preferred_element_type=jnp.float32)  # (TQ, S)
            m = jnp.max(s, axis=-1, keepdims=True)
            p = jnp.exp(s - m)
            l = jnp.sum(p, axis=-1, keepdims=True)
            pv = jnp.dot(p.astype(jnp.bfloat16), v_h,
                         preferred_element_type=jnp.float32)             # (TQ, hd)
            parts.append(pv * pl.reciprocal(l, approx=True))             # EUP slot
        blk = parts[0] if heads_per_group == 1 else jnp.concatenate(parts, axis=-1)
        ctx_ref[:, g * gw:(g + 1) * gw] = blk                # lane-dense store

    # Fused epilogue: O-proj + residual + LN2 + MLP + residual.
    ctx = ctx_ref[...]                                       # (TQ, D) f32
    x = x_ref[0]                                             # (TQ, D) f32 residual
    attn_out = jnp.dot(ctx.astype(jnp.bfloat16), wo_ref[...],
                       preferred_element_type=jnp.float32) + bo_ref[...]
    x1 = x + attn_out
    h2 = _layernorm(x1, ln2_g_ref[...], ln2_b_ref[...])
    m1 = jnp.dot(h2.astype(jnp.bfloat16), w1_ref[...],
                 preferred_element_type=jnp.float32) + b1_ref[...]
    ge = _gelu_tanh(m1)
    m2 = jnp.dot(ge.astype(jnp.bfloat16), w2_ref[...],
                 preferred_element_type=jnp.float32) + b2_ref[...]
    o_ref[0] = (x1 + m2).astype(o_ref.dtype)


def residual_attention_block(x, params, n_head, *, ts=256, tq=256):
    """x: (B, S, D) float32. params: dict of weights. Returns (B, S, D) f32."""
    B, S, D = x.shape
    assert D % n_head == 0, "n_state must be divisible by n_head"
    hd = D // n_head
    ts, tq = min(ts, S), min(tq, S)
    assert S % ts == 0 and S % tq == 0, "S must be tile-divisible"
    # TODO(synk): real Whisper S=1500 needs a padding + softmax-mask path.

    bf16, f32 = jnp.bfloat16, jnp.float32
    scale = 1.0 / (hd ** 0.5)

    # bf16 weights (MXU peak, half the HBM/VMEM traffic); f32 biases & LN params.
    ln1_g = params["attn_ln_g"].astype(f32)
    ln1_b = params["attn_ln_b"].astype(f32)
    w_qkv, b_qkv = params["w_qkv"], params["b_qkv"]
    # Lane-aligned per-output slices; fold 1/sqrt(head_dim) into Q (free).
    w_q = (w_qkv[:, 0 * D:1 * D] * scale).astype(bf16)
    b_q = (b_qkv[:, 0 * D:1 * D] * scale).astype(f32)
    w_k = w_qkv[:, 1 * D:2 * D].astype(bf16)
    b_k = b_qkv[:, 1 * D:2 * D].astype(f32)
    w_v = w_qkv[:, 2 * D:3 * D].astype(bf16)
    b_v = b_qkv[:, 2 * D:3 * D].astype(f32)
    w_o = params["w_o"].astype(bf16)
    b_o = params["b_o"].astype(f32)
    ln2_g = params["mlp_ln_g"].astype(f32)
    ln2_b = params["mlp_ln_b"].astype(f32)
    w_mlp1 = params["w_mlp1"].astype(bf16)
    b_mlp1 = params["b_mlp1"].astype(f32)
    w_mlp2 = params["w_mlp2"].astype(bf16)
    b_mlp2 = params["b_mlp2"].astype(f32)

    vmem_cap = _vmem_limit_bytes()

    # --- Kernel 1: LN1 + QKV projection ---
    q, k, v = pl.pallas_call(
        _ln_qkv_kernel,
        out_shape=(jax.ShapeDtypeStruct((B, S, D), bf16),
                   jax.ShapeDtypeStruct((B, S, D), bf16),
                   jax.ShapeDtypeStruct((B, S, D), bf16)),
        grid=(B, S // ts),
        in_specs=[pl.BlockSpec((1, ts, D), lambda b, s: (b, s, 0)),
                  _const_spec(ln1_g), _const_spec(ln1_b),
                  _const_spec(w_q), _const_spec(b_q),
                  _const_spec(w_k), _const_spec(b_k),
                  _const_spec(w_v), _const_spec(b_v)],
        out_specs=(pl.BlockSpec((1, ts, D), lambda b, s: (b, s, 0)),
                   pl.BlockSpec((1, ts, D), lambda b, s: (b, s, 0)),
                   pl.BlockSpec((1, ts, D), lambda b, s: (b, s, 0))),
        compiler_params=pltpu.CompilerParams(
            dimension_semantics=("parallel", "parallel"),
            vmem_limit_bytes=vmem_cap),
    )(x, ln1_g, ln1_b, w_q, b_q, w_k, b_k, w_v, b_v)

    # --- Kernel 2: attention (K/V resident per batch) + fused epilogue ---
    if hd < 128 and 128 % hd == 0:
        heads_per_group = math.gcd(n_head, 128 // hd)   # hd=64 -> head pairs
    else:
        heads_per_group = 1
    attn_kernel = functools.partial(_attn_mlp_kernel, n_head=n_head,
                                    heads_per_group=heads_per_group)
    out = pl.pallas_call(
        attn_kernel,
        out_shape=jax.ShapeDtypeStruct((B, S, D), x.dtype),
        grid=(B, S // tq),
        in_specs=[
            pl.BlockSpec((1, tq, D), lambda b, qi: (b, qi, 0)),   # x (residual)
            pl.BlockSpec((1, tq, D), lambda b, qi: (b, qi, 0)),   # q
            pl.BlockSpec((1, S, D), lambda b, qi: (b, 0, 0)),     # K: resident/batch
            pl.BlockSpec((1, S, D), lambda b, qi: (b, 0, 0)),     # V: resident/batch
            _const_spec(w_o), _const_spec(b_o),
            _const_spec(ln2_g), _const_spec(ln2_b),
            _const_spec(w_mlp1), _const_spec(b_mlp1),
            _const_spec(w_mlp2), _const_spec(b_mlp2),
        ],
        out_specs=pl.BlockSpec((1, tq, D), lambda b, qi: (b, qi, 0)),
        scratch_shapes=[pltpu.VMEM((tq, D), f32)],   # per-q-tile context buffer
        compiler_params=pltpu.CompilerParams(
            dimension_semantics=("parallel", "parallel"),
            vmem_limit_bytes=vmem_cap),
    )(x, q, k, v, w_o, b_o, ln2_g, ln2_b, w_mlp1, b_mlp1, w_mlp2, b_mlp2)
    return out


# --------------------------------------------------------------------------
# Pure-JAX reference (mirrors the kernel's bf16-operand / f32-accum matmuls)
# --------------------------------------------------------------------------
def _reference(x, params, n_head):
    B, S, D = x.shape
    hd = D // n_head
    scale = 1.0 / (hd ** 0.5)
    bf16 = jnp.bfloat16

    def ln(v, g, b):
        mu = jnp.mean(v, axis=-1, keepdims=True)
        var = jnp.mean((v - mu) ** 2, axis=-1, keepdims=True)
        return (v - mu) * jax.lax.rsqrt(var + 1e-5) * g + b

    def mm(a, w):
        return jnp.dot(a.astype(bf16), w.astype(bf16),
                       preferred_element_type=jnp.float32)

    h = ln(x, params["attn_ln_g"], params["attn_ln_b"])
    qkv = mm(h, params["w_qkv"]) + params["b_qkv"]
    q, k, v = qkv[..., :D], qkv[..., D:2 * D], qkv[..., 2 * D:]
    q = q.reshape(B, S, n_head, hd).transpose(0, 2, 1, 3)
    k = k.reshape(B, S, n_head, hd).transpose(0, 2, 1, 3)
    v = v.reshape(B, S, n_head, hd).transpose(0, 2, 1, 3)
    scores = jnp.einsum('bhqd,bhkd->bhqk', q.astype(bf16), k.astype(bf16),
                        preferred_element_type=jnp.float32) * scale
    p = jax.nn.softmax(scores, axis=-1)
    ctx = jnp.einsum('bhqk,bhkd->bhqd', p.astype(bf16), v.astype(bf16),
                     preferred_element_type=jnp.float32)
    ctx = ctx.transpose(0, 2, 1, 3).reshape(B, S, D)
    x1 = x + mm(ctx, params["w_o"]) + params["b_o"]
    h2 = ln(x1, params["mlp_ln_g"], params["mlp_ln_b"])
    m1 = mm(h2, params["w_mlp1"]) + params["b_mlp1"]
    g = 0.5 * m1 * (1.0 + jnp.tanh(0.7978845608028654 * (m1 + 0.044715 * m1 ** 3)))
    m2 = mm(g, params["w_mlp2"]) + params["b_mlp2"]
    return x1 + m2


if __name__ == "__main__":
    # Small but lane-dense / tile-divisible shapes (D multiple of 128, head_dim
    # 64 as in every Whisper config, S exercises the q-tile grid axis and the
    # resident-K/V attention path).
    B, S = 2, 256
    n_state, n_head = 128, 2
    n_mlp = n_state * 4

    key = jax.random.PRNGKey(0)
    ks = jax.random.split(key, 16)

    def rnd(k, shape, scale=0.05):
        return jax.random.normal(k, shape, dtype=jnp.float32) * scale

    params = {
        "attn_ln_g": jnp.ones((1, n_state), jnp.float32),
        "attn_ln_b": jnp.zeros((1, n_state), jnp.float32),
        "w_qkv": rnd(ks[0], (n_state, 3 * n_state)),
        "b_qkv": rnd(ks[1], (1, 3 * n_state)),
        "w_o": rnd(ks[2], (n_state, n_state)),
        "b_o": rnd(ks[3], (1, n_state)),
        "mlp_ln_g": jnp.ones((1, n_state), jnp.float32),
        "mlp_ln_b": jnp.zeros((1, n_state), jnp.float32),
        "w_mlp1": rnd(ks[4], (n_state, n_mlp)),
        "b_mlp1": rnd(ks[5], (1, n_mlp)),
        "w_mlp2": rnd(ks[6], (n_mlp, n_state)),
        "b_mlp2": rnd(ks[7], (1, n_state)),
    }

    x = jax.random.normal(ks[8], (B, S, n_state), dtype=jnp.float32)

    out = residual_attention_block(x, params, n_head)
    out = jax.block_until_ready(out)

    ref = _reference(x, params, n_head)
    assert out.shape == (B, S, n_state)
    assert bool(jnp.all(jnp.isfinite(out))), "non-finite output"
    assert jnp.allclose(out, ref, rtol=2e-2, atol=2e-2), "mismatch vs reference"

    print("KERNEL_OK")
</pallas_src>

<mosaic_0001>
module attributes {stable_mosaic.version = 11 : i64} {
  func.func @_ln_qkv_kernel(%arg0: i32, %arg1: i32, %arg2: memref<1x256x128xf32, #tpu.memory_space<vmem>>, %arg3: memref<1x128xf32, #tpu.memory_space<vmem>>, %arg4: memref<1x128xf32, #tpu.memory_space<vmem>>, %arg5: memref<128x128xbf16, #tpu.memory_space<vmem>>, %arg6: memref<1x128xf32, #tpu.memory_space<vmem>>, %arg7: memref<128x128xbf16, #tpu.memory_space<vmem>>, %arg8: memref<1x128xf32, #tpu.memory_space<vmem>>, %arg9: memref<128x128xbf16, #tpu.memory_space<vmem>>, %arg10: memref<1x128xf32, #tpu.memory_space<vmem>>, %arg11: memref<1x256x128xbf16, #tpu.memory_space<vmem>>, %arg12: memref<1x256x128xbf16, #tpu.memory_space<vmem>>, %arg13: memref<1x256x128xbf16, #tpu.memory_space<vmem>>) attributes {dimension_semantics = [#tpu.dimension_semantics<parallel>, #tpu.dimension_semantics<parallel>], iteration_bounds = array<i64: 2, 1>, scalar_prefetch = 0 : i64, scratch_operands = 0 : i64, tpu.core_type = #tpu.core_type<tc>, window_params = [{transform_indices = @transform_0, window_bounds = array<i64: 1, 256, 128>}, {pipeline_mode = #tpu.pipeline_mode<synchronous>, transform_indices = @transform_1, window_bounds = array<i64: 1, 128>}, {pipeline_mode = #tpu.pipeline_mode<synchronous>, transform_indices = @transform_2, window_bounds = array<i64: 1, 128>}, {pipeline_mode = #tpu.pipeline_mode<synchronous>, transform_indices = @transform_3, window_bounds = array<i64: 128, 128>}, {pipeline_mode = #tpu.pipeline_mode<synchronous>, transform_indices = @transform_4, window_bounds = array<i64: 1, 128>}, {pipeline_mode = #tpu.pipeline_mode<synchronous>, transform_indices = @transform_5, window_bounds = array<i64: 128, 128>}, {pipeline_mode = #tpu.pipeline_mode<synchronous>, transform_indices = @transform_6, window_bounds = array<i64: 1, 128>}, {pipeline_mode = #tpu.pipeline_mode<synchronous>, transform_indices = @transform_7, window_bounds = array<i64: 128, 128>}, {pipeline_mode = #tpu.pipeline_mode<synchronous>, transform_indices = @transform_8, window_bounds = array<i64: 1, 128>}, {transform_indices = @transform_9, window_bounds = array<i64: 1, 256, 128>}, {transform_indices = @transform_10, window_bounds = array<i64: 1, 256, 128>}, {transform_indices = @transform_11, window_bounds = array<i64: 1, 256, 128>}]} {
    %c0 = arith.constant 0 : index
    %c0_0 = arith.constant 0 : index
    %c0_1 = arith.constant 0 : index
    %0 = vector.load %arg2[%c0, %c0_0, %c0_1] : memref<1x256x128xf32, #tpu.memory_space<vmem>>, vector<1x256x128xf32>
    %1 = vector.shape_cast %0 : vector<1x256x128xf32> to vector<256x128xf32>
    %c0_2 = arith.constant 0 : index
    %c0_3 = arith.constant 0 : index
    %2 = vector.load %arg3[%c0_2, %c0_3] : memref<1x128xf32, #tpu.memory_space<vmem>>, vector<1x128xf32>
    %c0_4 = arith.constant 0 : index
    %c0_5 = arith.constant 0 : index
    %3 = vector.load %arg4[%c0_4, %c0_5] : memref<1x128xf32, #tpu.memory_space<vmem>>, vector<1x128xf32>
    %cst = arith.constant dense<0.000000e+00> : vector<256xf32>
    %4 = vector.multi_reduction <add>, %1, %cst [1] : vector<256x128xf32> to vector<256xf32>
    %5 = vector.shape_cast %4 : vector<256xf32> to vector<256x1xf32>
    %cst_6 = arith.constant 1.280000e+02 : f32
    %6 = vector.broadcast %cst_6 : f32 to vector<256x1xf32>
    %7 = arith.divf %5, %6 : vector<256x1xf32>
    %8 = vector.broadcast %7 : vector<256x1xf32> to vector<256x128xf32>
    %9 = arith.subf %1, %8 : vector<256x128xf32>
    %10 = arith.mulf %9, %9 : vector<256x128xf32>
    %cst_7 = arith.constant dense<0.000000e+00> : vector<256xf32>
    %11 = vector.multi_reduction <add>, %10, %cst_7 [1] : vector<256x128xf32> to vector<256xf32>
    %12 = vector.shape_cast %11 : vector<256xf32> to vector<256x1xf32>
    %cst_8 = arith.constant 1.280000e+02 : f32
    %13 = vector.broadcast %cst_8 : f32 to vector<256x1xf32>
    %14 = arith.divf %12, %13 : vector<256x1xf32>
    %15 = vector.broadcast %7 : vector<256x1xf32> to vector<256x128xf32>
    %16 = arith.subf %1, %15 : vector<256x128xf32>
    %cst_9 = arith.constant 9.99999974E-6 : f32
    %17 = vector.broadcast %cst_9 : f32 to vector<256x1xf32>
    %18 = arith.addf %14, %17 : vector<256x1xf32>
    %19 = math.rsqrt %18 : vector<256x1xf32>
    %20 = vector.broadcast %19 : vector<256x1xf32> to vector<256x128xf32>
    %21 = arith.mulf %16, %20 : vector<256x128xf32>
    %22 = vector.broadcast %2 : vector<1x128xf32> to vector<256x128xf32>
    %23 = arith.mulf %21, %22 : vector<256x128xf32>
    %24 = vector.broadcast %3 : vector<1x128xf32> to vector<256x128xf32>
    %25 = arith.addf %23, %24 : vector<256x128xf32>
    %26 = arith.truncf %25 : vector<256x128xf32> to vector<256x128xbf16>
    %c0_10 = arith.constant 0 : index
    %c0_11 = arith.constant 0 : index
    %27 = vector.load %arg5[%c0_10, %c0_11] : memref<128x128xbf16, #tpu.memory_space<vmem>>, vector<128x128xbf16>
    %cst_12 = arith.constant dense<0.000000e+00> : vector<256x128xf32>
    %28 = tpu.matmul %26, %27, %cst_12 {dimension_numbers = #tpu.dot_dimension_numbers<[1], [0], [0], [1], [0, 0, 1, 1], [], []>} : vector<256x128xbf16>, vector<128x128xbf16>, vector<256x128xf32> -> vector<256x128xf32>
    %c0_13 = arith.constant 0 : index
    %c0_14 = arith.constant 0 : index
    %29 = vector.load %arg6[%c0_13, %c0_14] : memref<1x128xf32, #tpu.memory_space<vmem>>, vector<1x128xf32>
    %30 = vector.broadcast %29 : vector<1x128xf32> to vector<256x128xf32>
    %31 = arith.addf %28, %30 : vector<256x128xf32>
    %32 = arith.truncf %31 : vector<256x128xf32> to vector<256x128xbf16>
    %c0_15 = arith.constant 0 : index
    %c0_16 = arith.constant 0 : index
    %c0_17 = arith.constant 0 : index
    %33 = vector.load %arg11[%c0_15, %c0_16, %c0_17] : memref<1x256x128xbf16, #tpu.memory_space<vmem>>, vector<1x256x128xbf16>
    %34 = vector.shape_cast %33 : vector<1x256x128xbf16> to vector<256x128xbf16>
    %35 = vector.shape_cast %32 : vector<256x128xbf16> to vector<1x256x128xbf16>
    tpu.vector_store %arg11[%c0_15, %c0_16, %c0_17], %35 {strides = array<i32>} : memref<1x256x128xbf16, #tpu.memory_space<vmem>>, vector<1x256x128xbf16>,
    %c0_18 = arith.constant 0 : index
    %c0_19 = arith.constant 0 : index
    %36 = vector.load %arg7[%c0_18, %c0_19] : memref<128x128xbf16, #tpu.memory_space<vmem>>, vector<128x128xbf16>
    %cst_20 = arith.constant dense<0.000000e+00> : vector<256x128xf32>
    %37 = tpu.matmul %26, %36, %cst_20 {dimension_numbers = #tpu.dot_dimension_numbers<[1], [0], [0], [1], [0, 0, 1, 1], [], []>} : vector<256x128xbf16>, vector<128x128xbf16>, vector<256x128xf32> -> vector<256x128xf32>
    %c0_21 = arith.constant 0 : index
    %c0_22 = arith.constant 0 : index
    %38 = vector.load %arg8[%c0_21, %c0_22] : memref<1x128xf32, #tpu.memory_space<vmem>>, vector<1x128xf32>
    %39 = vector.broadcast %38 : vector<1x128xf32> to vector<256x128xf32>
    %40 = arith.addf %37, %39 : vector<256x128xf32>
    %41 = arith.truncf %40 : vector<256x128xf32> to vector<256x128xbf16>
    %c0_23 = arith.constant 0 : index
    %c0_24 = arith.constant 0 : index
    %c0_25 = arith.constant 0 : index
    %42 = vector.load %arg12[%c0_23, %c0_24, %c0_25] : memref<1x256x128xbf16, #tpu.memory_space<vmem>>, vector<1x256x128xbf16>
    %43 = vector.shape_cast %42 : vector<1x256x128xbf16> to vector<256x128xbf16>
    %44 = vector.shape_cast %41 : vector<256x128xbf16> to vector<1x256x128xbf16>
    tpu.vector_store %arg12[%c0_23, %c0_24, %c0_25], %44 {strides = array<i32>} : memref<1x256x128xbf16, #tpu.memory_space<vmem>>, vector<1x256x128xbf16>,
    %c0_26 = arith.constant 0 : index
    %c0_27 = arith.constant 0 : index
    %45 = vector.load %arg9[%c0_26, %c0_27] : memref<128x128xbf16, #tpu.memory_space<vmem>>, vector<128x128xbf16>
    %cst_28 = arith.constant dense<0.000000e+00> : vector<256x128xf32>
    %46 = tpu.matmul %26, %45, %cst_28 {dimension_numbers = #tpu.dot_dimension_numbers<[1], [0], [0], [1], [0, 0, 1, 1], [], []>} : vector<256x128xbf16>, vector<128x128xbf16>, vector<256x128xf32> -> vector<256x128xf32>
    %c0_29 = arith.constant 0 : index
    %c0_30 = arith.constant 0 : index
    %47 = vector.load %arg10[%c0_29, %c0_30] : memref<1x128xf32, #tpu.memory_space<vmem>>, vector<1x128xf32>
    %48 = vector.broadcast %47 : vector<1x128xf32> to vector<256x128xf32>
    %49 = arith.addf %46, %48 : vector<256x128xf32>
    %50 = arith.truncf %49 : vector<256x128xf32> to vector<256x128xbf16>
    %c0_31 = arith.constant 0 : index
    %c0_32 = arith.constant 0 : index
    %c0_33 = arith.constant 0 : index
    %51 = vector.load %arg13[%c0_31, %c0_32, %c0_33] : memref<1x256x128xbf16, #tpu.memory_space<vmem>>, vector<1x256x128xbf16>
    %52 = vector.shape_cast %51 : vector<1x256x128xbf16> to vector<256x128xbf16>
    %53 = vector.shape_cast %50 : vector<256x128xbf16> to vector<1x256x128xbf16>
    tpu.vector_store %arg13[%c0_31, %c0_32, %c0_33], %53 {strides = array<i32>} : memref<1x256x128xbf16, #tpu.memory_space<vmem>>, vector<1x256x128xbf16>,
    return
  }
  func.func @transform_0(%arg0: i32, %arg1: i32) -> (i32, i32, i32) {
    %c0_i32 = arith.constant 0 : i32
    %c0_i32_0 = arith.constant 0 : i32
    return %arg0, %arg1, %c0_i32 : i32, i32, i32
  }
  func.func @transform_1(%arg0: i32, %arg1: i32) -> (i32, i32) {
    %c0_i32 = arith.constant 0 : i32
    %c0_i32_0 = arith.constant 0 : i32
    %c0_i32_1 = arith.constant 0 : i32
    return %c0_i32, %c0_i32_0 : i32, i32
  }
  func.func @transform_2(%arg0: i32, %arg1: i32) -> (i32, i32) {
    %c0_i32 = arith.constant 0 : i32
    %c0_i32_0 = arith.constant 0 : i32
    %c0_i32_1 = arith.constant 0 : i32
    return %c0_i32, %c0_i32_0 : i32, i32
  }
  func.func @transform_3(%arg0: i32, %arg1: i32) -> (i32, i32) {
    %c0_i32 = arith.constant 0 : i32
    %c0_i32_0 = arith.constant 0 : i32
    %c0_i32_1 = arith.constant 0 : i32
    return %c0_i32, %c0_i32_0 : i32, i32
  }
  func.func @transform_4(%arg0: i32, %arg1: i32) -> (i32, i32) {
    %c0_i32 = arith.constant 0 : i32
    %c0_i32_0 = arith.constant 0 : i32
    %c0_i32_1 = arith.constant 0 : i32
    return %c0_i32, %c0_i32_0 : i32, i32
  }
  func.func @transform_5(%arg0: i32, %arg1: i32) -> (i32, i32) {
    %c0_i32 = arith.constant 0 : i32
    %c0_i32_0 = arith.constant 0 : i32
    %c0_i32_1 = arith.constant 0 : i32
    return %c0_i32, %c0_i32_0 : i32, i32
  }
  func.func @transform_6(%arg0: i32, %arg1: i32) -> (i32, i32) {
    %c0_i32 = arith.constant 0 : i32
    %c0_i32_0 = arith.constant 0 : i32
    %c0_i32_1 = arith.constant 0 : i32
    return %c0_i32, %c0_i32_0 : i32, i32
  }
  func.func @transform_7(%arg0: i32, %arg1: i32) -> (i32, i32) {
    %c0_i32 = arith.constant 0 : i32
    %c0_i32_0 = arith.constant 0 : i32
    %c0_i32_1 = arith.constant 0 : i32
    return %c0_i32, %c0_i32_0 : i32, i32
  }
  func.func @transform_8(%arg0: i32, %arg1: i32) -> (i32, i32) {
    %c0_i32 = arith.constant 0 : i32
    %c0_i32_0 = arith.constant 0 : i32
    %c0_i32_1 = arith.constant 0 : i32
    return %c0_i32, %c0_i32_0 : i32, i32
  }
  func.func @transform_9(%arg0: i32, %arg1: i32) -> (i32, i32, i32) {
    %c0_i32 = arith.constant 0 : i32
    %c0_i32_0 = arith.constant 0 : i32
    return %arg0, %arg1, %c0_i32 : i32, i32, i32
  }
  func.func @transform_10(%arg0: i32, %arg1: i32) -> (i32, i32, i32) {
    %c0_i32 = arith.constant 0 : i32
    %c0_i32_0 = arith.constant 0 : i32
    return %arg0, %arg1, %c0_i32 : i32, i32, i32
  }
  func.func @transform_11(%arg0: i32, %arg1: i32) -> (i32, i32, i32) {
    %c0_i32 = arith.constant 0 : i32
    %c0_i32_0 = arith.constant 0 : i32
    return %arg0, %arg1, %c0_i32 : i32, i32, i32
  }
}

</mosaic_0001>

<llo_original>
// kernel: tpu_custom_call.1
$region0: #{tpu_custom_call.1}
  #allocation0 [shape = 'u32[]', space=smem, size = 0x4, offset = 0x4, fixed_abs, tag = 'smem constant byte address 0x4 - core index']
  #allocation1 [shape = 'u32[144,128]{1,0:T(1,128)}', space=vmem, size = 0x12000, scoped, tag = 'internal scratch']
  %s0 = inlined_call_operand.hbm [shape: f32[2,256,128], index: 0, kind: input, shape index: {}]
  %s1 = inlined_call_operand.hbm [shape: f32[1,128], index: 1, kind: input, shape index: {}]
  %s2 = inlined_call_operand.hbm [shape: f32[1,128], index: 2, kind: input, shape index: {}]
  %s3 = inlined_call_operand.hbm [shape: bf16[128,128], index: 3, kind: input, shape index: {}]
  %s4 = inlined_call_operand.hbm [shape: f32[1,128], index: 4, kind: input, shape index: {}]
  %s5 = inlined_call_operand.hbm [shape: bf16[128,128], index: 5, kind: input, shape index: {}]
  %s6 = inlined_call_operand.hbm [shape: f32[1,128], index: 6, kind: input, shape index: {}]
  %s7 = inlined_call_operand.hbm [shape: bf16[128,128], index: 7, kind: input, shape index: {}]
  %s8 = inlined_call_operand.hbm [shape: f32[1,128], index: 8, kind: input, shape index: {}]
  %s9 = inlined_call_operand.hbm [shape: bf16[2,256,128], index: 9, kind: output, shape index: {0}]
  %s10 = inlined_call_operand.hbm [shape: bf16[2,256,128], index: 10, kind: output, shape index: {1}]
  %s11 = inlined_call_operand.hbm [shape: bf16[2,256,128], index: 11, kind: output, shape index: {2}]
  %12 = xla_tuple %s9, %s10, %s11
  %s13 = sld [smem:[#allocation0]]
  $region121: #{tpu_custom_call.1} parent=0
    _
  %s15 = ssub.s32 1, %s13
  %s16 = scalar_select 0, %s15, %s13
  $region1: #{tpu_custom_call.1} parent=0
    #allocation2 [shape = 'u8[262144]{0}', space=vmem, size = 0x40000, scoped, tag = 'input window, operand 0']
    #allocation3 [shape = 's32[2]{0}', space=sflag, size = 0x8, scoped, tag = 'scoped memory for tpu_custom_call.1']
    #allocation4 [shape = 's32[2]{0}', space=sflag, size = 0x8, scoped, tag = 'scoped memory for tpu_custom_call.1']
    #allocation5 [shape = 'u8[512]{0}', space=vmem, size = 0x400, scoped, tag = 'input window, operand 1, single buffered']
    #allocation6 [shape = 's32[1]{0}', space=sflag, size = 0x4, scoped, tag = 'scoped memory for tpu_custom_call.1']
    #allocation7 [shape = 'u8[512]{0}', space=vmem, size = 0x400, scoped, tag = 'input window, operand 2, single buffered']
    #allocation8 [shape = 'u8[32768]{0}', space=vmem, size = 0x8000, scoped, tag = 'input window, operand 3, single buffered']
    #allocation9 [shape = 's32[1]{0}', space=sflag, size = 0x4, scoped, tag = 'scoped memory for tpu_custom_call.1']
    #allocation10 [shape = 'u8[512]{0}', space=vmem, size = 0x400, scoped, tag = 'input window, operand 4, single buffered']
    #allocation11 [shape = 'u8[32768]{0}', space=vmem, size = 0x8000, scoped, tag = 'input window, operand 5, single buffered']
    #allocation12 [shape = 's32[1]{0}', space=sflag, size = 0x4, scoped, tag = 'scoped memory for tpu_custom_call.1']
    #allocation13 [shape = 'u8[512]{0}', space=vmem, size = 0x400, scoped, tag = 'input window, operand 6, single buffered']
    #allocation14 [shape = 'u8[32768]{0}', space=vmem, size = 0x8000, scoped, tag = 'input window, operand 7, single buffered']
    #allocation15 [shape = 's32[1]{0}', space=sflag, size = 0x4, scoped, tag = 'scoped memory for tpu_custom_call.1']
    #allocation16 [shape = 'u8[512]{0}', space=vmem, size = 0x400, scoped, tag = 'input window, operand 8, single buffered']
    #allocation17 [shape = 'u8[131072]{0}', space=vmem, size = 0x20000, scoped, tag = 'output window, operand 0']
    #allocation18 [shape = 'u8[131072]{0}', space=vmem, size = 0x20000, scoped, tag = 'output window, operand 1']
    #allocation19 [shape = 's32[2]{0}', space=sflag, size = 0x8, scoped, tag = 'scoped memory for tpu_custom_call.1']
    #allocation20 [shape = 'u8[131072]{0}', space=vmem, size = 0x20000, scoped, tag = 'output window, operand 2']
    %17 = vsyncpa [#allocation3], 0
    %s18 = scalar_lea.sflag [#allocation3], 1
    %19 = vsyncpa %s18, 0
    %20 = vsyncpa [#allocation6], 0
    %21 = vsyncpa [#allocation9], 0
    %22 = vsyncpa [#allocation12], 0
    %23 = vsyncpa [#allocation15], 0
    %24 = vsyncpa [#allocation4], 0
    %s25 = scalar_lea.sflag [#allocation4], 1
    %26 = vsyncpa %s25, 0
    %27 = vsyncpa [#allocation19], 0
    %s28 = scalar_lea.sflag [#allocation19], 1
    %29 = vsyncpa %s28, 0
    loop: start=0, step=1, limit=4
    $region2: #{tpu_custom_call.1} parent=1 // loop_pre_header
      _
    $region3: #{tpu_custom_call.1} parent=1 // loop_header
      %s31 = sphi 0, %s35
      %p32 = scmp.ge.s32.totalorder %s31, 4
      %s38 = sphi 0, %s50
      %s39 = sphi 0, %s46
      %s40 = sphi 0, %s38
      %s41 = sphi 0, %s39
      %s42 = sphi 0, %s40
      %s43 = sphi 0, %s41
      %s55 = sphi 0, %s57
      %s58 = sphi 0, %s55
      %s59 = sphi 0, %s58
      %s75 = sphi 0, %s59
      %s79 = sphi 0, %s79
      %s81 = sphi 0, %s79
      %s82 = sphi 0, %s81
      %s96 = sphi 0, %s82
      %s100 = sphi 0, %s100
      %s102 = sphi 0, %s100
      %s103 = sphi 0, %s102
      %s117 = sphi 0, %s103
      %s121 = sphi 0, %s121
      %s123 = sphi 0, %s121
      %s124 = sphi 0, %s123
      %s138 = sphi 0, %s124
      %s142 = sphi 0, %s142
      %s144 = sphi 0, %s142
      %s145 = sphi 0, %s144
      %s159 = sphi 0, %s145
      %s163 = sphi 0, %s163
      %s165 = sphi 0, %s163
      %s166 = sphi 0, %s165
      %s180 = sphi 0, %s166
      %s184 = sphi 0, %s184
      %s186 = sphi 0, %s184
      %s187 = sphi 0, %s186
      %s201 = sphi 0, %s187
      %s205 = sphi 0, %s205
      %s207 = sphi 0, %s205
      %s208 = sphi 0, %s207
      %s222 = sphi 0, %s208
      %s226 = sphi 0, %s226
      %s228 = sphi 0, %s226
      %s229 = sphi 0, %s228
      %s243 = sphi 0, %s229
      %s251 = sphi 0, %s253
      %s254 = sphi 0, %s251
      %s255 = sphi 0, %s254
      %s271 = sphi 0, %s255
      %s279 = sphi 0, %s281
      %s282 = sphi 0, %s279
      %s283 = sphi 0, %s282
      %s299 = sphi 0, %s283
      %s307 = sphi 0, %s309
      %s310 = sphi 0, %s307
      %s311 = sphi 0, %s310
      %s327 = sphi 0, %s311
    $region4: #{tpu_custom_call.1} parent=1 // loop_header_branch
      %34 = sbr.rel (%p32) target = $region8
    $region5: #{tpu_custom_call.1} parent=1 // loop_body
      %s36 = ssub.s32 %s31, 1
      %s37 = ssub.s32 %s31, 2
      %s44 = sadd.s32 1, %s39
      %p45 = scmp.ge.s32.totalorder %s44, 1
      %s46 = scalar_select %p45, 0, %s44
      %s47 = sadd.s32 1, %s38
      %s48 = scalar_select %p45, %s47, %s38
      %p49 = scmp.ge.s32.totalorder %s48, 2
      %s50 = scalar_select %p49, 0, %s48
      %s51 = ssub.s32 %s38, %s50
      %s52 = ssub.s32 %s39, %s46
      %s53 = sor.u32 %s51, %s52
      %p54 = scmp.eq.s32.totalorder %s53, 0
      %s56 = sadd.s32 %s55, 1
      %s57 = scalar_select %p54, %s55, %s56
      %p60 = pneg %p54
      %p61 = scmp.eq.s32.totalorder %s31, 1
      %p62 = por %p60, %p61
      %p63 = scmp.ne.s32.totalorder %s55, %s58
      %p64 = scmp.eq.s32.totalorder %s31, 0
      %p65 = por %p63, %p64
      %p66 = scmp.ne.s32.totalorder %s55, %s58
      %p67 = scmp.eq.s32.totalorder %s36, 1
      %p68 = por %p66, %p67
      %p69 = scmp.ne.s32.totalorder %s58, %s59
      %p70 = scmp.eq.s32.totalorder %s36, 0
      %p71 = por %p69, %p70
      %p72 = scmp.ne.s32.totalorder %s58, %s59
      %p73 = scmp.eq.s32.totalorder %s37, 1
      %p74 = por %p72, %p73
      %p76 = scmp.ne.s32.totalorder %s59, %s75
      %p77 = scmp.eq.s32.totalorder %s37, 0
      %p78 = por %p76, %p77
      %s80 = sadd.s32 %s79, 1
      %p83 = scmp.eq.s32.totalorder %s31, 1
      %p84 = scmp.ne.s32.totalorder %s79, %s81
      %p85 = scmp.eq.s32.totalorder %s31, 0
      %p86 = por %p84, %p85
      %p87 = scmp.ne.s32.totalorder %s79, %s81
      %p88 = scmp.eq.s32.totalorder %s36, 1
      %p89 = por %p87, %p88
      %p90 = scmp.ne.s32.totalorder %s81, %s82
      %p91 = scmp.eq.s32.totalorder %s36, 0
      %p92 = por %p90, %p91
      %p93 = scmp.ne.s32.totalorder %s81, %s82
      %p94 = scmp.eq.s32.totalorder %s37, 1
      %p95 = por %p93, %p94
      %p97 = scmp.ne.s32.totalorder %s82, %s96
      %p98 = scmp.eq.s32.totalorder %s37, 0
      %p99 = por %p97, %p98
      %s101 = sadd.s32 %s100, 1
      %p104 = scmp.eq.s32.totalorder %s31, 1
      %p105 = scmp.ne.s32.totalorder %s100, %s102
      %p106 = scmp.eq.s32.totalorder %s31, 0
      %p107 = por %p105, %p106
      %p108 = scmp.ne.s32.totalorder %s100, %s102
      %p109 = scmp.eq.s32.totalorder %s36, 1
      %p110 = por %p108, %p109
      %p111 = scmp.ne.s32.totalorder %s102, %s103
      %p112 = scmp.eq.s32.totalorder %s36, 0
      %p113 = por %p111, %p112
      %p114 = scmp.ne.s32.totalorder %s102, %s103
      %p115 = scmp.eq.s32.totalorder %s37, 1
      %p116 = por %p114, %p115
      %p118 = scmp.ne.s32.totalorder %s103, %s117
      %p119 = scmp.eq.s32.totalorder %s37, 0
      %p120 = por %p118, %p119
      %s122 = sadd.s32 %s121, 1
      %p125 = scmp.eq.s32.totalorder %s31, 1
      %p126 = scmp.ne.s32.totalorder %s121, %s123
      %p127 = scmp.eq.s32.totalorder %s31, 0
      %p128 = por %p126, %p127
      %p129 = scmp.ne.s32.totalorder %s121, %s123
      %p130 = scmp.eq.s32.totalorder %s36, 1
      %p131 = por %p129, %p130
      %p132 = scmp.ne.s32.totalorder %s123, %s124
      %p133 = scmp.eq.s32.totalorder %s36, 0
      %p134 = por %p132, %p133
      %p135 = scmp.ne.s32.totalorder %s123, %s124
      %p136 = scmp.eq.s32.totalorder %s37, 1
      %p137 = por %p135, %p136
      %p139 = scmp.ne.s32.totalorder %s124, %s138
      %p140 = scmp.eq.s32.totalorder %s37, 0
      %p141 = por %p139, %p140
      %s143 = sadd.s32 %s142, 1
      %p146 = scmp.eq.s32.totalorder %s31, 1
      %p147 = scmp.ne.s32.totalorder %s142, %s144
      %p148 = scmp.eq.s32.totalorder %s31, 0
      %p149 = por %p147, %p148
      %p150 = scmp.ne.s32.totalorder %s142, %s144
      %p151 = scmp.eq.s32.totalorder %s36, 1
      %p152 = por %p150, %p151
      %p153 = scmp.ne.s32.totalorder %s144, %s145
      %p154 = scmp.eq.s32.totalorder %s36, 0
      %p155 = por %p153, %p154
      %p156 = scmp.ne.s32.totalorder %s144, %s145
      %p157 = scmp.eq.s32.totalorder %s37, 1
      %p158 = por %p156, %p157
      %p160 = scmp.ne.s32.totalorder %s145, %s159
      %p161 = scmp.eq.s32.totalorder %s37, 0
      %p162 = por %p160, %p161
      %s164 = sadd.s32 %s163, 1
      %p167 = scmp.eq.s32.totalorder %s31, 1
      %p168 = scmp.ne.s32.totalorder %s163, %s165
      %p169 = scmp.eq.s32.totalorder %s31, 0
      %p170 = por %p168, %p169
      %p171 = scmp.ne.s32.totalorder %s163, %s165
      %p172 = scmp.eq.s32.totalorder %s36, 1
      %p173 = por %p171, %p172
      %p174 = scmp.ne.s32.totalorder %s165, %s166
      %p175 = scmp.eq.s32.totalorder %s36, 0
      %p176 = por %p174, %p175
      %p177 = scmp.ne.s32.totalorder %s165, %s166
      %p178 = scmp.eq.s32.totalorder %s37, 1
      %p179 = por %p177, %p178
      %p181 = scmp.ne.s32.totalorder %s166, %s180
      %p182 = scmp.eq.s32.totalorder %s37, 0
      %p183 = por %p181, %p182
      %s185 = sadd.s32 %s184, 1
      %p188 = scmp.eq.s32.totalorder %s31, 1
      %p189 = scmp.ne.s32.totalorder %s184, %s186
      %p190 = scmp.eq.s32.totalorder %s31, 0
      %p191 = por %p189, %p190
      %p192 = scmp.ne.s32.totalorder %s184, %s186
      %p193 = scmp.eq.s32.totalorder %s36, 1
      %p194 = por %p192, %p193
      %p195 = scmp.ne.s32.totalorder %s186, %s187
      %p196 = scmp.eq.s32.totalorder %s36, 0
      %p197 = por %p195, %p196
      %p198 = scmp.ne.s32.totalorder %s186, %s187
      %p199 = scmp.eq.s32.totalorder %s37, 1
      %p200 = por %p198, %p199
      %p202 = scmp.ne.s32.totalorder %s187, %s201
      %p203 = scmp.eq.s32.totalorder %s37, 0
      %p204 = por %p202, %p203
      %s206 = sadd.s32 %s205, 1
      %p209 = scmp.eq.s32.totalorder %s31, 1
      %p210 = scmp.ne.s32.totalorder %s205, %s207
      %p211 = scmp.eq.s32.totalorder %s31, 0
      %p212 = por %p210, %p211
      %p213 = scmp.ne.s32.totalorder %s205, %s207
      %p214 = scmp.eq.s32.totalorder %s36, 1
      %p215 = por %p213, %p214
      %p216 = scmp.ne.s32.totalorder %s207, %s208
      %p217 = scmp.eq.s32.totalorder %s36, 0
      %p218 = por %p216, %p217
      %p219 = scmp.ne.s32.totalorder %s207, %s208
      %p220 = scmp.eq.s32.totalorder %s37, 1
      %p221 = por %p219, %p220
      %p223 = scmp.ne.s32.totalorder %s208, %s222
      %p224 = scmp.eq.s32.totalorder %s37, 0
      %p225 = por %p223, %p224
      %s227 = sadd.s32 %s226, 1
      %p230 = scmp.eq.s32.totalorder %s31, 1
      %p231 = scmp.ne.s32.totalorder %s226, %s228
      %p232 = scmp.eq.s32.totalorder %s31, 0
      %p233 = por %p231, %p232
      %p234 = scmp.ne.s32.totalorder %s226, %s228
      %p235 = scmp.eq.s32.totalorder %s36, 1
      %p236 = por %p234, %p235
      %p237 = scmp.ne.s32.totalorder %s228, %s229
      %p238 = scmp.eq.s32.totalorder %s36, 0
      %p239 = por %p237, %p238
      %p240 = scmp.ne.s32.totalorder %s228, %s229
      %p241 = scmp.eq.s32.totalorder %s37, 1
      %p242 = por %p240, %p241
      %p244 = scmp.ne.s32.totalorder %s229, %s243
      %p245 = scmp.eq.s32.totalorder %s37, 0
      %p246 = por %p244, %p245
      %s247 = ssub.s32 %s38, %s50
      %s248 = ssub.s32 %s39, %s46
      %s249 = sor.u32 %s247, %s248
      %p250 = scmp.eq.s32.totalorder %s249, 0
      %s252 = sadd.s32 %s251, 1
      %s253 = scalar_select %p250, %s251, %s252
      %p256 = pneg %p250
      %p257 = scmp.eq.s32.totalorder %s31, 1
      %p258 = por %p256, %p257
      %p259 = scmp.ne.s32.totalorder %s251, %s254
      %p260 = scmp.eq.s32.totalorder %s31, 0
      %p261 = por %p259, %p260
      %p262 = scmp.ne.s32.totalorder %s251, %s254
      %p263 = scmp.eq.s32.totalorder %s36, 1
      %p264 = por %p262, %p263
      %p265 = scmp.ne.s32.totalorder %s254, %s255
      %p266 = scmp.eq.s32.totalorder %s36, 0
      %p267 = por %p265, %p266
      %p268 = scmp.ne.s32.totalorder %s254, %s255
      %p269 = scmp.eq.s32.totalorder %s37, 1
      %p270 = por %p268, %p269
      %p272 = scmp.ne.s32.totalorder %s255, %s271
      %p273 = scmp.eq.s32.totalorder %s37, 0
      %p274 = por %p272, %p273
      %s275 = ssub.s32 %s38, %s50
      %s276 = ssub.s32 %s39, %s46
      %s277 = sor.u32 %s275, %s276
      %p278 = scmp.eq.s32.totalorder %s277, 0
      %s280 = sadd.s32 %s279, 1
      %s281 = scalar_select %p278, %s279, %s280
      %p284 = pneg %p278
      %p285 = scmp.eq.s32.totalorder %s31, 1
      %p286 = por %p284, %p285
      %p287 = scmp.ne.s32.totalorder %s279, %s282
      %p288 = scmp.eq.s32.totalorder %s31, 0
      %p289 = por %p287, %p288
      %p290 = scmp.ne.s32.totalorder %s279, %s282
      %p291 = scmp.eq.s32.totalorder %s36, 1
      %p292 = por %p290, %p291
      %p293 = scmp.ne.s32.totalorder %s282, %s283
      %p294 = scmp.eq.s32.totalorder %s36, 0
      %p295 = por %p293, %p294
      %p296 = scmp.ne.s32.totalorder %s282, %s283
      %p297 = scmp.eq.s32.totalorder %s37, 1
      %p298 = por %p296, %p297
      %p300 = scmp.ne.s32.totalorder %s283, %s299
      %p301 = scmp.eq.s32.totalorder %s37, 0
      %p302 = por %p300, %p301
      %s303 = ssub.s32 %s38, %s50
      %s304 = ssub.s32 %s39, %s46
      %s305 = sor.u32 %s303, %s304
      %p306 = scmp.eq.s32.totalorder %s305, 0
      %s308 = sadd.s32 %s307, 1
      %s309 = scalar_select %p306, %s307, %s308
      %p312 = pneg %p306
      %p313 = scmp.eq.s32.totalorder %s31, 1
      %p314 = por %p312, %p313
      %p315 = scmp.ne.s32.totalorder %s307, %s310
      %p316 = scmp.eq.s32.totalorder %s31, 0
      %p317 = por %p315, %p316
      %p318 = scmp.ne.s32.totalorder %s307, %s310
      %p319 = scmp.eq.s32.totalorder %s36, 1
      %p320 = por %p318, %p319
      %p321 = scmp.ne.s32.totalorder %s310, %s311
      %p322 = scmp.eq.s32.totalorder %s36, 0
      %p323 = por %p321, %p322
      %p324 = scmp.ne.s32.totalorder %s310, %s311
      %p325 = scmp.eq.s32.totalorder %s37, 1
      %p326 = por %p324, %p325
      %p328 = scmp.ne.s32.totalorder %s311, %s327
      %p329 = scmp.eq.s32.totalorder %s37, 0
      %p330 = por %p328, %p329
      %p331 = scmp.le.s32.totalorder 1, %s31
      %p332 = scmp.lt.s32.totalorder %s31, 3
      %p333 = pnand %p331, %p332
      %p334 = pneg %p333
      // Predicated region
      $region9: #{tpu_custom_call.1} parent=5 // pred_check
        _
      $region10: #{tpu_custom_call.1} parent=5 // pred_check_branch
        %336 = sbr.rel (%p333) target = $region12
      $region11: #{tpu_custom_call.1} parent=5 // pred_region
        %s337 = ssub.s32 %s31, 1
        // Predicated region
        $region13: #{tpu_custom_call.1} parent=11 // pred_check
          %p338 = pneg %p92
        $region14: #{tpu_custom_call.1} parent=11 // pred_check_branch
          %340 = sbr.rel (%p338) target = $region16
        $region15: #{tpu_custom_call.1} parent=11 // pred_region
          %s342 = ssub.s32 16, 16
          %343 = vsyncadd [#allocation6], %s342
          %s345 = sshll.u32 [#allocation5], 4
          %s346 = int_to_ptr.vmem [resolvable:$true] %s345
          %348 = dma.hbm_to_vmem [thread:$0]  %s1, 16, %s346, [#allocation6]
        $region16: #{tpu_custom_call.1} parent=11 // pred_fallthru
          _
        // Predicated region
        $region17: #{tpu_custom_call.1} parent=11 // pred_check
          %p349 = pneg %p113
        $region18: #{tpu_custom_call.1} parent=11 // pred_check_branch
          %351 = sbr.rel (%p349) target = $region20
        $region19: #{tpu_custom_call.1} parent=11 // pred_region
          %s353 = ssub.s32 16, 16
          %354 = vsyncadd [#allocation6], %s353
          %s356 = sshll.u32 [#allocation7], 4
          %s357 = int_to_ptr.vmem [resolvable:$true] %s356
          %359 = dma.hbm_to_vmem [thread:$0]  %s2, 16, %s357, [#allocation6]
        $region20: #{tpu_custom_call.1} parent=11 // pred_fallthru
          _
        // Predicated region
        $region21: #{tpu_custom_call.1} parent=11 // pred_check
          %p360 = pneg %p134
        $region22: #{tpu_custom_call.1} parent=11 // pred_check_branch
          %362 = sbr.rel (%p360) target = $region24
        $region23: #{tpu_custom_call.1} parent=11 // pred_region
          %s364 = ssub.s32 1024, 1024
          %365 = vsyncadd [#allocation9], %s364
          %s366 = sshll.u32 [#allocation8], 4
          %s367 = int_to_ptr.vmem [resolvable:$true] %s366
          %372 = dma.hbm_to_vmem [thread:$0]  %s3, 1024, %s367, [#allocation9], 64, 64, 4
        $region24: #{tpu_custom_call.1} parent=11 // pred_fallthru
          _
        // Predicated region
        $region25: #{tpu_custom_call.1} parent=11 // pred_check
          %p373 = pneg %p155
        $region26: #{tpu_custom_call.1} parent=11 // pred_check_branch
          %375 = sbr.rel (%p373) target = $region28
        $region27: #{tpu_custom_call.1} parent=11 // pred_region
          %s377 = ssub.s32 16, 16
          %378 = vsyncadd [#allocation9], %s377
          %s380 = sshll.u32 [#allocation10], 4
          %s381 = int_to_ptr.vmem [resolvable:$true] %s380
          %383 = dma.hbm_to_vmem [thread:$0]  %s4, 16, %s381, [#allocation9]
        $region28: #{tpu_custom_call.1} parent=11 // pred_fallthru
          _
        // Predicated region
        $region29: #{tpu_custom_call.1} parent=11 // pred_check
          %p384 = pneg %p176
        $region30: #{tpu_custom_call.1} parent=11 // pred_check_branch
          %386 = sbr.rel (%p384) target = $region32
        $region31: #{tpu_custom_call.1} parent=11 // pred_region
          %s388 = ssub.s32 1024, 1024
          %389 = vsyncadd [#allocation12], %s388
          %s390 = sshll.u32 [#allocation11], 4
          %s391 = int_to_ptr.vmem [resolvable:$true] %s390
          %396 = dma.hbm_to_vmem [thread:$0]  %s5, 1024, %s391, [#allocation12], 64, 64, 4
        $region32: #{tpu_custom_call.1} parent=11 // pred_fallthru
          _
        // Predicated region
        $region33: #{tpu_custom_call.1} parent=11 // pred_check
          %p397 = pneg %p197
        $region34: #{tpu_custom_call.1} parent=11 // pred_check_branch
          %399 = sbr.rel (%p397) target = $region36
        $region35: #{tpu_custom_call.1} parent=11 // pred_region
          %s401 = ssub.s32 16, 16
          %402 = vsyncadd [#allocation12], %s401
          %s404 = sshll.u32 [#allocation13], 4
          %s405 = int_to_ptr.vmem [resolvable:$true] %s404
          %407 = dma.hbm_to_vmem [thread:$0]  %s6, 16, %s405, [#allocation12]
        $region36: #{tpu_custom_call.1} parent=11 // pred_fallthru
          _
        // Predicated region
        $region37: #{tpu_custom_call.1} parent=11 // pred_check
          %p408 = pneg %p218
        $region38: #{tpu_custom_call.1} parent=11 // pred_check_branch
          %410 = sbr.rel (%p408) target = $region40
        $region39: #{tpu_custom_call.1} parent=11 // pred_region
          %s412 = ssub.s32 1024, 1024
          %413 = vsyncadd [#allocation15], %s412
          %s414 = sshll.u32 [#allocation14], 4
          %s415 = int_to_ptr.vmem [resolvable:$true] %s414
          %420 = dma.hbm_to_vmem [thread:$0]  %s7, 1024, %s415, [#allocation15], 64, 64, 4
        $region40: #{tpu_custom_call.1} parent=11 // pred_fallthru
          _
        // Predicated region
        $region41: #{tpu_custom_call.1} parent=11 // pred_check
          %p421 = pneg %p239
        $region42: #{tpu_custom_call.1} parent=11 // pred_check_branch
          %423 = sbr.rel (%p421) target = $region44
        $region43: #{tpu_custom_call.1} parent=11 // pred_region
          %s425 = ssub.s32 16, 16
          %426 = vsyncadd [#allocation15], %s425
          %s428 = sshll.u32 [#allocation16], 4
          %s429 = int_to_ptr.vmem [resolvable:$true] %s428
          %431 = dma.hbm_to_vmem [thread:$0]  %s8, 16, %s429, [#allocation15]
        $region44: #{tpu_custom_call.1} parent=11 // pred_fallthru
          _
      $region12: #{tpu_custom_call.1} parent=5 // pred_fallthru
        _
      %p432 = scmp.lt.s32.totalorder %s31, 2
      // Predicated region
      $region45: #{tpu_custom_call.1} parent=5 // pred_check
        %p433 = pneg %p432
      $region46: #{tpu_custom_call.1} parent=5 // pred_check_branch
        %435 = sbr.rel (%p433) target = $region48
      $region47: #{tpu_custom_call.1} parent=5 // pred_region
        // Predicated region
        $region49: #{tpu_custom_call.1} parent=47 // pred_check
          %p436 = pneg %p65
        $region50: #{tpu_custom_call.1} parent=47 // pred_check_branch
          %438 = sbr.rel (%p436) target = $region52
        $region51: #{tpu_custom_call.1} parent=47 // pred_region
          %s439 = sand.u32 %s55, 1
          %s440 = scalar_lea.sflag [#allocation3], %s439
          %s441 = sand.u32 %s55, 1
          %s442 = smul.addr %s441, 256
          %s443 = scalar_lea.vmem [#allocation2], %s442
          %s444 = smul.u32 32, %s39
          %s446 = ssub.s32 4096, 4096
          %447 = vsyncadd %s440, %s446
          %s448 = smul.addr %s38, 32
          %s449 = sadd.s32 %s444, %s448
          %s450 = smul.addr %s449, 128
          %s451 = scalar_lea.hbm %s0, %s450
          %s452 = sshll.u32 %s443, 4
          %s453 = int_to_ptr.vmem [resolvable:$true] %s452
          %458 = dma.hbm_to_vmem [thread:$0]  %s451, 4096, %s453, %s440, 128, 128, 8
        $region52: #{tpu_custom_call.1} parent=47 // pred_fallthru
          _
      $region48: #{tpu_custom_call.1} parent=5 // pred_fallthru
        _
      %p459 = scmp.le.s32.totalorder 1, %s31
      %p460 = scmp.lt.s32.totalorder %s31, 3
      %p461 = pnand %p459, %p460
      %p462 = pneg %p461
      // Predicated region
      $region53: #{tpu_custom_call.1} parent=5 // pred_check
        _
      $region54: #{tpu_custom_call.1} parent=5 // pred_check_branch
        %464 = sbr.rel (%p461) target = $region56
      $region55: #{tpu_custom_call.1} parent=5 // pred_region
        %s465 = ssub.s32 %s31, 1
        %s466 = sand.u32 %s58, 1
        %s467 = scalar_lea.sflag [#allocation3], %s466
        %s468 = sand.u32 %s58, 1
        %s469 = smul.addr %s468, 256
        %s470 = scalar_lea.vmem [#allocation2], %s469
        // Predicated region
        $region57: #{tpu_custom_call.1} parent=55 // pred_check
          %p471 = pneg %p71
        $region58: #{tpu_custom_call.1} parent=55 // pred_check_branch
          %473 = sbr.rel (%p471) target = $region60
        $region59: #{tpu_custom_call.1} parent=55 // pred_region
          %474 = dma.done %s467, 4096
        $region60: #{tpu_custom_call.1} parent=55 // pred_fallthru
          _
        // Predicated region
        $region61: #{tpu_custom_call.1} parent=55 // pred_check
          %p475 = pneg %p92
        $region62: #{tpu_custom_call.1} parent=55 // pred_check_branch
          %477 = sbr.rel (%p475) target = $region64
        $region63: #{tpu_custom_call.1} parent=55 // pred_region
          %478 = dma.done [#allocation6], 16
        $region64: #{tpu_custom_call.1} parent=55 // pred_fallthru
          _
        // Predicated region
        $region65: #{tpu_custom_call.1} parent=55 // pred_check
          %p479 = pneg %p113
        $region66: #{tpu_custom_call.1} parent=55 // pred_check_branch
          %481 = sbr.rel (%p479) target = $region68
        $region67: #{tpu_custom_call.1} parent=55 // pred_region
          %482 = dma.done [#allocation6], 16
        $region68: #{tpu_custom_call.1} parent=55 // pred_fallthru
          _
        // Predicated region
        $region69: #{tpu_custom_call.1} parent=55 // pred_check
          %p483 = pneg %p134
        $region70: #{tpu_custom_call.1} parent=55 // pred_check_branch
          %485 = sbr.rel (%p483) target = $region72
        $region71: #{tpu_custom_call.1} parent=55 // pred_region
          %486 = dma.done [#allocation9], 1024
        $region72: #{tpu_custom_call.1} parent=55 // pred_fallthru
          _
        // Predicated region
        $region73: #{tpu_custom_call.1} parent=55 // pred_check
          %p487 = pneg %p155
        $region74: #{tpu_custom_call.1} parent=55 // pred_check_branch
          %489 = sbr.rel (%p487) target = $region76
        $region75: #{tpu_custom_call.1} parent=55 // pred_region
          %490 = dma.done [#allocation9], 16
        $region76: #{tpu_custom_call.1} parent=55 // pred_fallthru
          _
        // Predicated region
        $region77: #{tpu_custom_call.1} parent=55 // pred_check
          %p491 = pneg %p176
        $region78: #{tpu_custom_call.1} parent=55 // pred_check_branch
          %493 = sbr.rel (%p491) target = $region80
        $region79: #{tpu_custom_call.1} parent=55 // pred_region
          %494 = dma.done [#allocation12], 1024
        $region80: #{tpu_custom_call.1} parent=55 // pred_fallthru
          _
        // Predicated region
        $region81: #{tpu_custom_call.1} parent=55 // pred_check
          %p495 = pneg %p197
        $region82: #{tpu_custom_call.1} parent=55 // pred_check_branch
          %497 = sbr.rel (%p495) target = $region84
        $region83: #{tpu_custom_call.1} parent=55 // pred_region
          %498 = dma.done [#allocation12], 16
        $region84: #{tpu_custom_call.1} parent=55 // pred_fallthru
          _
        // Predicated region
        $region85: #{tpu_custom_call.1} parent=55 // pred_check
          %p499 = pneg %p218
        $region86: #{tpu_custom_call.1} parent=55 // pred_check_branch
          %501 = sbr.rel (%p499) target = $region88
        $region87: #{tpu_custom_call.1} parent=55 // pred_region
          %502 = dma.done [#allocation15], 1024
        $region88: #{tpu_custom_call.1} parent=55 // pred_fallthru
          _
        // Predicated region
        $region89: #{tpu_custom_call.1} parent=55 // pred_check
          %p503 = pneg %p239
        $region90: #{tpu_custom_call.1} parent=55 // pred_check_branch
          %505 = sbr.rel (%p503) target = $region92
        $region91: #{tpu_custom_call.1} parent=55 // pred_region
          %506 = dma.done [#allocation15], 16
        $region92: #{tpu_custom_call.1} parent=55 // pred_fallthru
          _
        %s507 = sand.u32 %s58, 1
        %s508 = scalar_lea.sflag [#allocation3], %s507
        %s509 = sand.u32 %s58, 1
        %s510 = smul.addr %s509, 256
        %s511 = scalar_lea.vmem [#allocation2], %s510
        %p512 = pneg %p71
        %p513 = pneg %p68
        %p514 = pneg %p92
        %p515 = pneg %p89
        %p516 = pneg %p113
        %p517 = pneg %p110
        %p518 = pneg %p134
        %p519 = pneg %p131
        %p520 = pneg %p155
        %p521 = pneg %p152
        %p522 = pneg %p176
        %p523 = pneg %p173
        %p524 = pneg %p197
        %p525 = pneg %p194
        %p526 = pneg %p218
        %p527 = pneg %p215
        %p528 = pneg %p239
        %p529 = pneg %p236
        %p530 = pneg %p267
        %p531 = pneg %p264
        %s532 = sand.u32 %s254, 1
        %s533 = scalar_lea.sflag [#allocation4], %s532
        %s534 = sand.u32 %s254, 1
        %s535 = smul.addr %s534, 128
        %s536 = scalar_lea.vmem [#allocation17], %s535
        %p537 = pneg %p295
        %p538 = pneg %p292
        %s539 = sand.u32 %s36, 1
        %s540 = scalar_lea.sflag [#allocation19], %s539
        %s541 = sand.u32 %s282, 1
        %s542 = smul.addr %s541, 128
        %s543 = scalar_lea.vmem [#allocation18], %s542
        %p544 = pneg %p323
        %p545 = pneg %p320
        %s546 = sand.u32 %s36, 1
        %s547 = scalar_lea.sflag [#allocation19], %s546
        %s548 = sand.u32 %s310, 1
        %s549 = smul.addr %s548, 128
        %s550 = scalar_lea.vmem [#allocation20], %s549
        %s551 = smul.u32 32, %s41
        %s552 = smul.u32 32, %s41
        %s553 = smul.u32 32, %s41
        %s554 = smul.u32 32, %s41
        %v556 = vld [vmem:[%s470] sm:$0xff]
        %v557 = vld [vmem:[%s470 + $0x8] sm:$0xff]
        %v558 = vld [vmem:[%s470 + $0x10] sm:$0xff]
        %v559 = vld [vmem:[%s470 + $0x18] sm:$0xff]
        %v560 = vld [vmem:[%s470 + $0x20] sm:$0xff]
        %v561 = vld [vmem:[%s470 + $0x28] sm:$0xff]
        %v562 = vld [vmem:[%s470 + $0x30] sm:$0xff]
        %v563 = vld [vmem:[%s470 + $0x38] sm:$0xff]
        %v564 = vld [vmem:[%s470 + $0x40] sm:$0xff]
        %v565 = vld [vmem:[%s470 + $0x48] sm:$0xff]
        %v566 = vld [vmem:[%s470 + $0x50] sm:$0xff]
        %v567 = vld [vmem:[%s470 + $0x58] sm:$0xff]
        %v568 = vld [vmem:[%s470 + $0x60] sm:$0xff]
        %v569 = vld [vmem:[%s470 + $0x68] sm:$0xff]
        %v570 = vld [vmem:[%s470 + $0x70] sm:$0xff]
        %v571 = vld [vmem:[%s470 + $0x78] sm:$0xff]
        %v572 = vld [vmem:[%s470 + $0x80] sm:$0xff]
        %v573 = vld [vmem:[%s470 + $0x88] sm:$0xff]
        %v574 = vld [vmem:[%s470 + $0x90] sm:$0xff]
        %v575 = vld [vmem:[%s470 + $0x98] sm:$0xff]
        %v576 = vld [vmem:[%s470 + $0xa0] sm:$0xff]
        %v577 = vld [vmem:[%s470 + $0xa8] sm:$0xff]
        %v578 = vld [vmem:[%s470 + $0xb0] sm:$0xff]
        %v579 = vld [vmem:[%s470 + $0xb8] sm:$0xff]
        %v580 = vld [vmem:[%s470 + $0xc0] sm:$0xff]
        %v581 = vld [vmem:[%s470 + $0xc8] sm:$0xff]
        %v582 = vld [vmem:[%s470 + $0xd0] sm:$0xff]
        %v583 = vld [vmem:[%s470 + $0xd8] sm:$0xff]
        %v584 = vld [vmem:[%s470 + $0xe0] sm:$0xff]
        %v585 = vld [vmem:[%s470 + $0xe8] sm:$0xff]
        %v586 = vld [vmem:[%s470 + $0xf0] sm:$0xff]
        %v587 = vld [vmem:[%s470 + $0xf8] sm:$0xff]
        %v588 = vld [vmem:[#allocation5] sm:$0x1]
        %v589 = vld [vmem:[#allocation7] sm:$0x1]
        %590 = vadd.xlane.f32.xlu0 %v556
        %v591 = vpop.xlane.xlu0 %590
        %592 = vadd.xlane.f32.xlu0 %v557
        %v593 = vpop.xlane.xlu0 %592
        %594 = vadd.xlane.f32.xlu0 %v558
        %v595 = vpop.xlane.xlu0 %594
        %596 = vadd.xlane.f32.xlu0 %v559
        %v597 = vpop.xlane.xlu0 %596
        %598 = vadd.xlane.f32.xlu0 %v560
        %v599 = vpop.xlane.xlu0 %598
        %600 = vadd.xlane.f32.xlu0 %v561
        %v601 = vpop.xlane.xlu0 %600
        %602 = vadd.xlane.f32.xlu0 %v562
        %v603 = vpop.xlane.xlu0 %602
        %604 = vadd.xlane.f32.xlu0 %v563
        %v605 = vpop.xlane.xlu0 %604
        %606 = vadd.xlane.f32.xlu0 %v564
        %v607 = vpop.xlane.xlu0 %606
        %608 = vadd.xlane.f32.xlu0 %v565
        %v609 = vpop.xlane.xlu0 %608
        %610 = vadd.xlane.f32.xlu0 %v566
        %v611 = vpop.xlane.xlu0 %610
        %612 = vadd.xlane.f32.xlu0 %v567
        %v613 = vpop.xlane.xlu0 %612
        %614 = vadd.xlane.f32.xlu0 %v568
        %v615 = vpop.xlane.xlu0 %614
        %616 = vadd.xlane.f32.xlu0 %v569
        %v617 = vpop.xlane.xlu0 %616
        %618 = vadd.xlane.f32.xlu0 %v570
        %v619 = vpop.xlane.xlu0 %618
        %620 = vadd.xlane.f32.xlu0 %v571
        %v621 = vpop.xlane.xlu0 %620
        %622 = vadd.xlane.f32.xlu0 %v572
        %v623 = vpop.xlane.xlu0 %622
        %624 = vadd.xlane.f32.xlu0 %v573
        %v625 = vpop.xlane.xlu0 %624
        %626 = vadd.xlane.f32.xlu0 %v574
        %v627 = vpop.xlane.xlu0 %626
        %628 = vadd.xlane.f32.xlu0 %v575
        %v629 = vpop.xlane.xlu0 %628
        %630 = vadd.xlane.f32.xlu0 %v576
        %v631 = vpop.xlane.xlu0 %630
        %632 = vadd.xlane.f32.xlu0 %v577
        %v633 = vpop.xlane.xlu0 %632
        %634 = vadd.xlane.f32.xlu0 %v578
        %v635 = vpop.xlane.xlu0 %634
        %636 = vadd.xlane.f32.xlu0 %v579
        %v637 = vpop.xlane.xlu0 %636
        %638 = vadd.xlane.f32.xlu0 %v580
        %v639 = vpop.xlane.xlu0 %638
        %640 = vadd.xlane.f32.xlu0 %v581
        %v641 = vpop.xlane.xlu0 %640
        %642 = vadd.xlane.f32.xlu0 %v582
        %v643 = vpop.xlane.xlu0 %642
        %644 = vadd.xlane.f32.xlu0 %v583
        %v645 = vpop.xlane.xlu0 %644
        %646 = vadd.xlane.f32.xlu0 %v584
        %v647 = vpop.xlane.xlu0 %646
        %648 = vadd.xlane.f32.xlu0 %v585
        %v649 = vpop.xlane.xlu0 %648
        %650 = vadd.xlane.f32.xlu0 %v586
        %v651 = vpop.xlane.xlu0 %650
        %652 = vadd.xlane.f32.xlu0 %v587
        %v653 = vpop.xlane.xlu0 %652
        %v654 = vrcp.pop 128.0
        %v655 = vmul.f32 %v591, %v654
        %v656 = vmul.f32 %v593, %v654
        %v657 = vmul.f32 %v595, %v654
        %v658 = vmul.f32 %v597, %v654
        %v659 = vmul.f32 %v599, %v654
        %v660 = vmul.f32 %v601, %v654
        %v661 = vmul.f32 %v603, %v654
        %v662 = vmul.f32 %v605, %v654
        %v663 = vmul.f32 %v607, %v654
        %v664 = vmul.f32 %v609, %v654
        %v665 = vmul.f32 %v611, %v654
        %v666 = vmul.f32 %v613, %v654
        %v667 = vmul.f32 %v615, %v654
        %v668 = vmul.f32 %v617, %v654
        %v669 = vmul.f32 %v619, %v654
        %v670 = vmul.f32 %v621, %v654
        %v671 = vmul.f32 %v623, %v654
        %v672 = vmul.f32 %v625, %v654
        %v673 = vmul.f32 %v627, %v654
        %v674 = vmul.f32 %v629, %v654
        %v675 = vmul.f32 %v631, %v654
        %v676 = vmul.f32 %v633, %v654
        %v677 = vmul.f32 %v635, %v654
        %v678 = vmul.f32 %v637, %v654
        %v679 = vmul.f32 %v639, %v654
        %v680 = vmul.f32 %v641, %v654
        %v681 = vmul.f32 %v643, %v654
        %v682 = vmul.f32 %v645, %v654
        %v683 = vmul.f32 %v647, %v654
        %v684 = vmul.f32 %v649, %v654
        %v685 = vmul.f32 %v651, %v654
        %v686 = vmul.f32 %v653, %v654
        %v687 = vsub.f32 %v556, %v655
        %v688 = vsub.f32 %v557, %v656
        %v689 = vsub.f32 %v558, %v657
        %v690 = vsub.f32 %v559, %v658
        %v691 = vsub.f32 %v560, %v659
        %v692 = vsub.f32 %v561, %v660
        %v693 = vsub.f32 %v562, %v661
        %v694 = vsub.f32 %v563, %v662
        %v695 = vsub.f32 %v564, %v663
        %v696 = vsub.f32 %v565, %v664
        %v697 = vsub.f32 %v566, %v665
        %v698 = vsub.f32 %v567, %v666
        %v699 = vsub.f32 %v568, %v667
        %v700 = vsub.f32 %v569, %v668
        %v701 = vsub.f32 %v570, %v669
        %v702 = vsub.f32 %v571, %v670
        %v703 = vsub.f32 %v572, %v671
        %v704 = vsub.f32 %v573, %v672
        %v705 = vsub.f32 %v574, %v673
        %v706 = vsub.f32 %v575, %v674
        %v707 = vsub.f32 %v576, %v675
        %v708 = vsub.f32 %v577, %v676
        %v709 = vsub.f32 %v578, %v677
        %v710 = vsub.f32 %v579, %v678
        %v711 = vsub.f32 %v580, %v679
        %v712 = vsub.f32 %v581, %v680
        %v713 = vsub.f32 %v582, %v681
        %v714 = vsub.f32 %v583, %v682
        %v715 = vsub.f32 %v584, %v683
        %v716 = vsub.f32 %v585, %v684
        %v717 = vsub.f32 %v586, %v685
        %v718 = vsub.f32 %v587, %v686
        %v719 = vmul.f32 %v687, %v687
        %v720 = vmul.f32 %v688, %v688
        %v721 = vmul.f32 %v689, %v689
        %v722 = vmul.f32 %v690, %v690
        %v723 = vmul.f32 %v691, %v691
        %v724 = vmul.f32 %v692, %v692
        %v725 = vmul.f32 %v693, %v693
        %v726 = vmul.f32 %v694, %v694
        %v727 = vmul.f32 %v695, %v695
        %v728 = vmul.f32 %v696, %v696
        %v729 = vmul.f32 %v697, %v697
        %v730 = vmul.f32 %v698, %v698
        %v731 = vmul.f32 %v699, %v699
        %v732 = vmul.f32 %v700, %v700
        %v733 = vmul.f32 %v701, %v701
        %v734 = vmul.f32 %v702, %v702
        %v735 = vmul.f32 %v703, %v703
        %v736 = vmul.f32 %v704, %v704
        %v737 = vmul.f32 %v705, %v705
        %v738 = vmul.f32 %v706, %v706
        %v739 = vmul.f32 %v707, %v707
        %v740 = vmul.f32 %v708, %v708
        %v741 = vmul.f32 %v709, %v709
        %v742 = vmul.f32 %v710, %v710
        %v743 = vmul.f32 %v711, %v711
        %v744 = vmul.f32 %v712, %v712
        %v745 = vmul.f32 %v713, %v713
        %v746 = vmul.f32 %v714, %v714
        %v747 = vmul.f32 %v715, %v715
        %v748 = vmul.f32 %v716, %v716
        %v749 = vmul.f32 %v717, %v717
        %v750 = vmul.f32 %v718, %v718
        %751 = vadd.xlane.f32.xlu0 %v719
        %v752 = vpop.xlane.xlu0 %751
        %753 = vadd.xlane.f32.xlu0 %v720
        %v754 = vpop.xlane.xlu0 %753
        %755 = vadd.xlane.f32.xlu0 %v721
        %v756 = vpop.xlane.xlu0 %755
        %757 = vadd.xlane.f32.xlu0 %v722
        %v758 = vpop.xlane.xlu0 %757
        %759 = vadd.xlane.f32.xlu0 %v723
        %v760 = vpop.xlane.xlu0 %759
        %761 = vadd.xlane.f32.xlu0 %v724
        %v762 = vpop.xlane.xlu0 %761
        %763 = vadd.xlane.f32.xlu0 %v725
        %v764 = vpop.xlane.xlu0 %763
        %765 = vadd.xlane.f32.xlu0 %v726
        %v766 = vpop.xlane.xlu0 %765
        %767 = vadd.xlane.f32.xlu0 %v727
        %v768 = vpop.xlane.xlu0 %767
        %769 = vadd.xlane.f32.xlu0 %v728
        %v770 = vpop.xlane.xlu0 %769
        %771 = vadd.xlane.f32.xlu0 %v729
        %v772 = vpop.xlane.xlu0 %771
        %773 = vadd.xlane.f32.xlu0 %v730
        %v774 = vpop.xlane.xlu0 %773
        %775 = vadd.xlane.f32.xlu0 %v731
        %v776 = vpop.xlane.xlu0 %775
        %777 = vadd.xlane.f32.xlu0 %v732
        %v778 = vpop.xlane.xlu0 %777
        %779 = vadd.xlane.f32.xlu0 %v733
        %v780 = vpop.xlane.xlu0 %779
        %781 = vadd.xlane.f32.xlu0 %v734
        %v782 = vpop.xlane.xlu0 %781
        %783 = vadd.xlane.f32.xlu0 %v735
        %v784 = vpop.xlane.xlu0 %783
        %785 = vadd.xlane.f32.xlu0 %v736
        %v786 = vpop.xlane.xlu0 %785
        %787 = vadd.xlane.f32.xlu0 %v737
        %v788 = vpop.xlane.xlu0 %787
        %789 = vadd.xlane.f32.xlu0 %v738
        %v790 = vpop.xlane.xlu0 %789
        %791 = vadd.xlane.f32.xlu0 %v739
        %v792 = vpop.xlane.xlu0 %791
        %793 = vadd.xlane.f32.xlu0 %v740
        %v794 = vpop.xlane.xlu0 %793
        %795 = vadd.xlane.f32.xlu0 %v741
        %v796 = vpop.xlane.xlu0 %795
        %797 = vadd.xlane.f32.xlu0 %v742
        %v798 = vpop.xlane.xlu0 %797
        %799 = vadd.xlane.f32.xlu0 %v743
        %v800 = vpop.xlane.xlu0 %799
        %801 = vadd.xlane.f32.xlu0 %v744
        %v802 = vpop.xlane.xlu0 %801
        %803 = vadd.xlane.f32.xlu0 %v745
        %v804 = vpop.xlane.xlu0 %803
        %805 = vadd.xlane.f32.xlu0 %v746
        %v806 = vpop.xlane.xlu0 %805
        %807 = vadd.xlane.f32.xlu0 %v747
        %v808 = vpop.xlane.xlu0 %807
        %809 = vadd.xlane.f32.xlu0 %v748
        %v810 = vpop.xlane.xlu0 %809
        %811 = vadd.xlane.f32.xlu0 %v749
        %v812 = vpop.xlane.xlu0 %811
        %813 = vadd.xlane.f32.xlu0 %v750
        %v814 = vpop.xlane.xlu0 %813
        %v815 = vmul.f32 %v752, %v654
        %v816 = vmul.f32 %v754, %v654
        %v817 = vmul.f32 %v756, %v654
        %v818 = vmul.f32 %v758, %v654
        %v819 = vmul.f32 %v760, %v654
        %v820 = vmul.f32 %v762, %v654
        %v821 = vmul.f32 %v764, %v654
        %v822 = vmul.f32 %v766, %v654
        %v823 = vmul.f32 %v768, %v654
        %v824 = vmul.f32 %v770, %v654
        %v825 = vmul.f32 %v772, %v654
        %v826 = vmul.f32 %v774, %v654
        %v827 = vmul.f32 %v776, %v654
        %v828 = vmul.f32 %v778, %v654
        %v829 = vmul.f32 %v780, %v654
        %v830 = vmul.f32 %v782, %v654
        %v831 = vmul.f32 %v784, %v654
        %v832 = vmul.f32 %v786, %v654
        %v833 = vmul.f32 %v788, %v654
        %v834 = vmul.f32 %v790, %v654
        %v835 = vmul.f32 %v792, %v654
        %v836 = vmul.f32 %v794, %v654
        %v837 = vmul.f32 %v796, %v654
        %v838 = vmul.f32 %v798, %v654
        %v839 = vmul.f32 %v800, %v654
        %v840 = vmul.f32 %v802, %v654
        %v841 = vmul.f32 %v804, %v654
        %v842 = vmul.f32 %v806, %v654
        %v843 = vmul.f32 %v808, %v654
        %v844 = vmul.f32 %v810, %v654
        %v845 = vmul.f32 %v812, %v654
        %v846 = vmul.f32 %v814, %v654
        %v847 = vadd.f32 %v815, 1e-05
        %v848 = vadd.f32 %v816, 1e-05
        %v849 = vadd.f32 %v817, 1e-05
        %v850 = vadd.f32 %v818, 1e-05
        %v851 = vadd.f32 %v819, 1e-05
        %v852 = vadd.f32 %v820, 1e-05
        %v853 = vadd.f32 %v821, 1e-05
        %v854 = vadd.f32 %v822, 1e-05
        %v855 = vadd.f32 %v823, 1e-05
        %v856 = vadd.f32 %v824, 1e-05
        %v857 = vadd.f32 %v825, 1e-05
        %v858 = vadd.f32 %v826, 1e-05
        %v859 = vadd.f32 %v827, 1e-05
        %v860 = vadd.f32 %v828, 1e-05
        %v861 = vadd.f32 %v829, 1e-05
        %v862 = vadd.f32 %v830, 1e-05
        %v863 = vadd.f32 %v831, 1e-05
        %v864 = vadd.f32 %v832, 1e-05
        %v865 = vadd.f32 %v833, 1e-05
        %v866 = vadd.f32 %v834, 1e-05
        %v867 = vadd.f32 %v835, 1e-05
        %v868 = vadd.f32 %v836, 1e-05
        %v869 = vadd.f32 %v837, 1e-05
        %v870 = vadd.f32 %v838, 1e-05
        %v871 = vadd.f32 %v839, 1e-05
        %v872 = vadd.f32 %v840, 1e-05
        %v873 = vadd.f32 %v841, 1e-05
        %v874 = vadd.f32 %v842, 1e-05
        %v875 = vadd.f32 %v843, 1e-05
        %v876 = vadd.f32 %v844, 1e-05
        %v877 = vadd.f32 %v845, 1e-05
        %v878 = vadd.f32 %v846, 1e-05
        %v879 = vrsqrt.pop %v847
        %v880 = vrsqrt.pop %v848
        %v881 = vrsqrt.pop %v849
        %v882 = vrsqrt.pop %v850
        %v883 = vrsqrt.pop %v851
        %v884 = vrsqrt.pop %v852
        %v885 = vrsqrt.pop %v853
        %v886 = vrsqrt.pop %v854
        %v887 = vrsqrt.pop %v855
        %v888 = vrsqrt.pop %v856
        %v889 = vrsqrt.pop %v857
        %v890 = vrsqrt.pop %v858
        %v891 = vrsqrt.pop %v859
        %v892 = vrsqrt.pop %v860
        %v893 = vrsqrt.pop %v861
        %v894 = vrsqrt.pop %v862
        %v895 = vrsqrt.pop %v863
        %v896 = vrsqrt.pop %v864
        %v897 = vrsqrt.pop %v865
        %v898 = vrsqrt.pop %v866
        %v899 = vrsqrt.pop %v867
        %v900 = vrsqrt.pop %v868
        %v901 = vrsqrt.pop %v869
        %v902 = vrsqrt.pop %v870
        %v903 = vrsqrt.pop %v871
        %v904 = vrsqrt.pop %v872
        %v905 = vrsqrt.pop %v873
        %v906 = vrsqrt.pop %v874
        %v907 = vrsqrt.pop %v875
        %v908 = vrsqrt.pop %v876
        %v909 = vrsqrt.pop %v877
        %v910 = vrsqrt.pop %v878
        %v911 = vmul.f32 %v687, %v879
        %v912 = vmul.f32 %v688, %v880
        %v913 = vmul.f32 %v689, %v881
        %v914 = vmul.f32 %v690, %v882
        %v915 = vmul.f32 %v691, %v883
        %v916 = vmul.f32 %v692, %v884
        %v917 = vmul.f32 %v693, %v885
        %v918 = vmul.f32 %v694, %v886
        %v919 = vmul.f32 %v695, %v887
        %v920 = vmul.f32 %v696, %v888
        %v921 = vmul.f32 %v697, %v889
        %v922 = vmul.f32 %v698, %v890
        %v923 = vmul.f32 %v699, %v891
        %v924 = vmul.f32 %v700, %v892
        %v925 = vmul.f32 %v701, %v893
        %v926 = vmul.f32 %v702, %v894
        %v927 = vmul.f32 %v703, %v895
        %v928 = vmul.f32 %v704, %v896
        %v929 = vmul.f32 %v705, %v897
        %v930 = vmul.f32 %v706, %v898
        %v931 = vmul.f32 %v707, %v899
        %v932 = vmul.f32 %v708, %v900
        %v933 = vmul.f32 %v709, %v901
        %v934 = vmul.f32 %v710, %v902
        %v935 = vmul.f32 %v711, %v903
        %v936 = vmul.f32 %v712, %v904
        %v937 = vmul.f32 %v713, %v905
        %v938 = vmul.f32 %v714, %v906
        %v939 = vmul.f32 %v715, %v907
        %v940 = vmul.f32 %v716, %v908
        %v941 = vmul.f32 %v717, %v909
        %v942 = vmul.f32 %v718, %v910
        %v944 = vlaneseq
        %v945 = vshrl.u32 %v944, 7
        %v946 = vsub.s32 0, %v945
        %v947 = vrot.slane %v588, %v946
        %v949 = vmul.f32 %v911, %v947
        %v950 = vmul.f32 %v912, %v947
        %v951 = vmul.f32 %v913, %v947
        %v952 = vmul.f32 %v914, %v947
        %v953 = vmul.f32 %v915, %v947
        %v954 = vmul.f32 %v916, %v947
        %v955 = vmul.f32 %v917, %v947
        %v956 = vmul.f32 %v918, %v947
        %v957 = vmul.f32 %v919, %v947
        %v958 = vmul.f32 %v920, %v947
        %v959 = vmul.f32 %v921, %v947
        %v960 = vmul.f32 %v922, %v947
        %v961 = vmul.f32 %v923, %v947
        %v962 = vmul.f32 %v924, %v947
        %v963 = vmul.f32 %v925, %v947
        %v964 = vmul.f32 %v926, %v947
        %v965 = vmul.f32 %v927, %v947
        %v966 = vmul.f32 %v928, %v947
        %v967 = vmul.f32 %v929, %v947
        %v968 = vmul.f32 %v930, %v947
        %v969 = vmul.f32 %v931, %v947
        %v970 = vmul.f32 %v932, %v947
        %v971 = vmul.f32 %v933, %v947
        %v972 = vmul.f32 %v934, %v947
        %v973 = vmul.f32 %v935, %v947
        %v974 = vmul.f32 %v936, %v947
        %v975 = vmul.f32 %v937, %v947
        %v976 = vmul.f32 %v938, %v947
        %v977 = vmul.f32 %v939, %v947
        %v978 = vmul.f32 %v940, %v947
        %v979 = vmul.f32 %v941, %v947
        %v980 = vmul.f32 %v942, %v947
        %v982 = vlaneseq
        %v983 = vshrl.u32 %v982, 7
        %v984 = vsub.s32 0, %v983
        %v985 = vrot.slane %v589, %v984
        %v987 = vadd.f32 %v949, %v985
        %v988 = vadd.f32 %v950, %v985
        %v989 = vadd.f32 %v951, %v985
        %v990 = vadd.f32 %v952, %v985
        %v991 = vadd.f32 %v953, %v985
        %v992 = vadd.f32 %v954, %v985
        %v993 = vadd.f32 %v955, %v985
        %v994 = vadd.f32 %v956, %v985
        %v995 = vadd.f32 %v957, %v985
        %v996 = vadd.f32 %v958, %v985
        %v997 = vadd.f32 %v959, %v985
        %v998 = vadd.f32 %v960, %v985
        %v999 = vadd.f32 %v961, %v985
        %v1000 = vadd.f32 %v962, %v985
        %v1001 = vadd.f32 %v963, %v985
        %v1002 = vadd.f32 %v964, %v985
        %v1003 = vadd.f32 %v965, %v985
        %v1004 = vadd.f32 %v966, %v985
        %v1005 = vadd.f32 %v967, %v985
        %v1006 = vadd.f32 %v968, %v985
        %v1007 = vadd.f32 %v969, %v985
        %v1008 = vadd.f32 %v970, %v985
        %v1009 = vadd.f32 %v971, %v985
        %v1010 = vadd.f32 %v972, %v985
        %v1011 = vadd.f32 %v973, %v985
        %v1012 = vadd.f32 %v974, %v985
        %v1013 = vadd.f32 %v975, %v985
        %v1014 = vadd.f32 %v976, %v985
        %v1015 = vadd.f32 %v977, %v985
        %v1016 = vadd.f32 %v978, %v985
        %v1017 = vadd.f32 %v979, %v985
        %v1018 = vadd.f32 %v980, %v985
        %v1019 = vpack.c.bf16 %v988, %v987
        %v1020 = vpack.c.bf16 %v990, %v989
        %v1021 = vpack.c.bf16 %v992, %v991
        %v1022 = vpack.c.bf16 %v994, %v993
        %v1023 = vpack.c.bf16 %v996, %v995
        %v1024 = vpack.c.bf16 %v998, %v997
        %v1025 = vpack.c.bf16 %v1000, %v999
        %v1026 = vpack.c.bf16 %v1002, %v1001
        %v1027 = vpack.c.bf16 %v1004, %v1003
        %v1028 = vpack.c.bf16 %v1006, %v1005
        %v1029 = vpack.c.bf16 %v1008, %v1007
        %v1030 = vpack.c.bf16 %v1010, %v1009
        %v1031 = vpack.c.bf16 %v1012, %v1011
        %v1032 = vpack.c.bf16 %v1014, %v1013
        %v1033 = vpack.c.bf16 %v1016, %v1015
        %v1034 = vpack.c.bf16 %v1018, %v1017
        %v1035 = vld [vmem:[#allocation8] sm:$0xf]
        %v1036 = vld [vmem:[#allocation8 + $0x4] sm:$0xf]
        %v1037 = vld [vmem:[#allocation8 + $0x8] sm:$0xf]
        %v1038 = vld [vmem:[#allocation8 + $0xc] sm:$0xf]
        %v1039 = vld [vmem:[#allocation8 + $0x10] sm:$0xf]
        %v1040 = vld [vmem:[#allocation8 + $0x14] sm:$0xf]
        %v1041 = vld [vmem:[#allocation8 + $0x18] sm:$0xf]
        %v1042 = vld [vmem:[#allocation8 + $0x1c] sm:$0xf]
        %v1043 = vld [vmem:[#allocation8 + $0x20] sm:$0xf]
        %v1044 = vld [vmem:[#allocation8 + $0x24] sm:$0xf]
        %v1045 = vld [vmem:[#allocation8 + $0x28] sm:$0xf]
        %v1046 = vld [vmem:[#allocation8 + $0x2c] sm:$0xf]
        %v1047 = vld [vmem:[#allocation8 + $0x30] sm:$0xf]
        %v1048 = vld [vmem:[#allocation8 + $0x34] sm:$0xf]
        %v1049 = vld [vmem:[#allocation8 + $0x38] sm:$0xf]
        %v1050 = vld [vmem:[#allocation8 + $0x3c] sm:$0xf]
        %v1051 = vld [vmem:[#allocation10] sm:$0x1]
        %v1053 = vlaneseq
        %v1054 = vshrl.u32 %v1053, 7
        %v1055 = vsub.s32 0, %v1054
        %v1056 = vrot.slane %v1051, %v1055
        %v1074 = vunpack.c.l.b16 %v1035
        %v1075 = vunpack.c.l.b16 %v1036
        %v1076 = vunpack.c.l.b16 %v1037
        %v1077 = vunpack.c.l.b16 %v1038
        %v1078 = vunpack.c.l.b16 %v1039
        %v1079 = vunpack.c.l.b16 %v1040
        %v1080 = vunpack.c.l.b16 %v1041
        %v1081 = vunpack.c.l.b16 %v1042
        %v1082 = vunpack.c.l.b16 %v1043
        %v1083 = vunpack.c.l.b16 %v1044
        %v1084 = vunpack.c.l.b16 %v1045
        %v1085 = vunpack.c.l.b16 %v1046
        %v1086 = vunpack.c.l.b16 %v1047
        %v1087 = vunpack.c.l.b16 %v1048
        %v1088 = vunpack.c.l.b16 %v1049
        %v1089 = vunpack.c.l.b16 %v1050
        %v1090 = vpack.c.b16 %v1075, %v1074
        %v1091 = vpack.c.b16 %v1077, %v1076
        %v1092 = vpack.c.b16 %v1079, %v1078
        %v1093 = vpack.c.b16 %v1081, %v1080
        %v1094 = vpack.c.b16 %v1083, %v1082
        %v1095 = vpack.c.b16 %v1085, %v1084
        %v1096 = vpack.c.b16 %v1087, %v1086
        %v1097 = vpack.c.b16 %v1089, %v1088
        %1106 = vmatprep.subr.bf16.mxu0 0
        %1107 = vmatpush1.bf16.msra.mxu0 %v1090
        %1108 = vmatprep.subr.bf16.mxu0 0
        %1109 = vmatpush1.bf16.msra.mxu0 %v1091
        %1110 = vmatprep.subr.bf16.mxu0 0
        %1111 = vmatpush1.bf16.msra.mxu0 %v1092
        %1112 = vmatprep.subr.bf16.mxu0 0
        %1113 = vmatpush1.bf16.msra.mxu0 %v1093
        %1114 = vmatprep.subr.bf16.mxu0 0
        %1115 = vmatpush1.bf16.msra.mxu0 %v1094
        %1116 = vmatprep.subr.bf16.mxu0 0
        %1117 = vmatpush1.bf16.msra.mxu0 %v1095
        %1118 = vmatprep.subr.bf16.mxu0 0
        %1119 = vmatpush1.bf16.msra.mxu0 %v1096
        %1120 = vmatprep.subr.bf16.mxu0 0
        %1121 = vmatpush1.bf16.msra.mxu0 %v1097
        %1122 = vmatprep.subr.bf16.mxu0 0
        %1123 = vmatpush1.bf16.msra.mxu0 0
        %1124 = vmatprep.subr.bf16.mxu0 0
        %1125 = vmatpush1.bf16.msra.mxu0 0
        %1126 = vmatprep.subr.bf16.mxu0 0
        %1127 = vmatpush1.bf16.msra.mxu0 0
        %1128 = vmatprep.subr.bf16.mxu0 0
        %1129 = vmatpush1.bf16.msra.mxu0 0
        %1130 = vmatprep.subr.bf16.mxu0 0
        %1131 = vmatpush1.bf16.msra.mxu0 0
        %1132 = vmatprep.subr.bf16.mxu0 0
        %1133 = vmatpush1.bf16.msra.mxu0 0
        %1134 = vmatprep.subr.bf16.mxu0 0
        %1135 = vmatpush1.bf16.msra.mxu0 0
        %1136 = vmatprep.subr.bf16.mxu0 0
        %1137 = vmatpush1.bf16.msra.mxu0 0
        %1138 = vmatprep.mubr.bf16.mxu0 0
        %1139 = vmatmul.mubr.bf16.gmra.mrb[0].mxu0 %v1019
        %v1140 = vpop.f32.mrb[0].mxu0
        %v1141 = vadd.f32 %v1056, %v1140
        %v1142 = vpop.f32.mrb[0].mxu0
        %v1143 = vpop.f32.mrb[0].mxu0
        %v1144 = vadd.f32 %v1056, %v1143
        %v1145 = vpop.f32.mrb[0].mxu0
        %1146 = vmatprep.mubr.bf16.mxu0 0
        %1147 = vmatmul.mubr.bf16.gmra.mrb[0].mxu0 %v1020
        %v1148 = vpop.f32.mrb[0].mxu0
        %v1149 = vadd.f32 %v1056, %v1148
        %v1150 = vpop.f32.mrb[0].mxu0
        %v1151 = vpop.f32.mrb[0].mxu0
        %v1152 = vadd.f32 %v1056, %v1151
        %v1153 = vpop.f32.mrb[0].mxu0
        %1154 = vmatprep.mubr.bf16.mxu0 0
        %1155 = vmatmul.mubr.bf16.gmra.mrb[0].mxu0 %v1021
        %v1156 = vpop.f32.mrb[0].mxu0
        %v1157 = vadd.f32 %v1056, %v1156
        %v1158 = vpop.f32.mrb[0].mxu0
        %v1159 = vpop.f32.mrb[0].mxu0
        %v1160 = vadd.f32 %v1056, %v1159
        %v1161 = vpop.f32.mrb[0].mxu0
        %1162 = vmatprep.mubr.bf16.mxu0 0
        %1163 = vmatmul.mubr.bf16.gmra.mrb[0].mxu0 %v1022
        %v1164 = vpop.f32.mrb[0].mxu0
        %v1165 = vadd.f32 %v1056, %v1164
        %v1166 = vpop.f32.mrb[0].mxu0
        %v1167 = vpop.f32.mrb[0].mxu0
        %v1168 = vadd.f32 %v1056, %v1167
        %v1169 = vpop.f32.mrb[0].mxu0
        %1170 = vmatprep.mubr.bf16.mxu0 0
        %1171 = vmatmul.mubr.bf16.gmra.mrb[0].mxu0 %v1023
        %v1172 = vpop.f32.mrb[0].mxu0
        %v1173 = vadd.f32 %v1056, %v1172
        %v1174 = vpop.f32.mrb[0].mxu0
        %v1175 = vpop.f32.mrb[0].mxu0
        %v1176 = vadd.f32 %v1056, %v1175
        %v1177 = vpop.f32.mrb[0].mxu0
        %1178 = vmatprep.mubr.bf16.mxu0 0
        %1179 = vmatmul.mubr.bf16.gmra.mrb[0].mxu0 %v1024
        %v1180 = vpop.f32.mrb[0].mxu0
        %v1181 = vadd.f32 %v1056, %v1180
        %v1182 = vpop.f32.mrb[0].mxu0
        %v1183 = vpop.f32.mrb[0].mxu0
        %v1184 = vadd.f32 %v1056, %v1183
        %v1185 = vpop.f32.mrb[0].mxu0
        %1186 = vmatprep.mubr.bf16.mxu0 0
        %1187 = vmatmul.mubr.bf16.gmra.mrb[0].mxu0 %v1025
        %v1188 = vpop.f32.mrb[0].mxu0
        %v1189 = vadd.f32 %v1056, %v1188
        %v1190 = vpop.f32.mrb[0].mxu0
        %v1191 = vpop.f32.mrb[0].mxu0
        %v1192 = vadd.f32 %v1056, %v1191
        %v1193 = vpop.f32.mrb[0].mxu0
        %1194 = vmatprep.mubr.bf16.mxu0 0
        %1195 = vmatmul.mubr.bf16.gmra.mrb[0].mxu0 %v1026
        %v1196 = vpop.f32.mrb[0].mxu0
        %v1197 = vadd.f32 %v1056, %v1196
        %v1198 = vpop.f32.mrb[0].mxu0
        %v1199 = vpop.f32.mrb[0].mxu0
        %v1200 = vadd.f32 %v1056, %v1199
        %v1201 = vpop.f32.mrb[0].mxu0
        %1202 = vmatprep.mubr.bf16.mxu0 0
        %1203 = vmatmul.mubr.bf16.gmra.mrb[0].mxu0 %v1027
        %v1204 = vpop.f32.mrb[0].mxu0
        %v1205 = vadd.f32 %v1056, %v1204
        %v1206 = vpop.f32.mrb[0].mxu0
        %v1207 = vpop.f32.mrb[0].mxu0
        %v1208 = vadd.f32 %v1056, %v1207
        %v1209 = vpop.f32.mrb[0].mxu0
        %1210 = vmatprep.mubr.bf16.mxu0 0
        %1211 = vmatmul.mubr.bf16.gmra.mrb[0].mxu0 %v1028
        %v1212 = vpop.f32.mrb[0].mxu0
        %v1213 = vadd.f32 %v1056, %v1212
        %v1214 = vpop.f32.mrb[0].mxu0
        %v1215 = vpop.f32.mrb[0].mxu0
        %v1216 = vadd.f32 %v1056, %v1215
        %v1217 = vpop.f32.mrb[0].mxu0
        %1218 = vmatprep.mubr.bf16.mxu0 0
        %1219 = vmatmul.mubr.bf16.gmra.mrb[0].mxu0 %v1029
        %v1220 = vpop.f32.mrb[0].mxu0
        %v1221 = vadd.f32 %v1056, %v1220
        %v1222 = vpop.f32.mrb[0].mxu0
        %v1223 = vpop.f32.mrb[0].mxu0
        %v1224 = vadd.f32 %v1056, %v1223
        %v1225 = vpop.f32.mrb[0].mxu0
        %1226 = vmatprep.mubr.bf16.mxu0 0
        %1227 = vmatmul.mubr.bf16.gmra.mrb[0].mxu0 %v1030
        %v1228 = vpop.f32.mrb[0].mxu0
        %v1229 = vadd.f32 %v1056, %v1228
        %v1230 = vpop.f32.mrb[0].mxu0
        %v1231 = vpop.f32.mrb[0].mxu0
        %v1232 = vadd.f32 %v1056, %v1231
        %v1233 = vpop.f32.mrb[0].mxu0
        %1234 = vmatprep.mubr.bf16.mxu0 0
        %1235 = vmatmul.mubr.bf16.gmra.mrb[0].mxu0 %v1031
        %v1236 = vpop.f32.mrb[0].mxu0
        %v1237 = vadd.f32 %v1056, %v1236
        %v1238 = vpop.f32.mrb[0].mxu0
        %v1239 = vpop.f32.mrb[0].mxu0
        %v1240 = vadd.f32 %v1056, %v1239
        %v1241 = vpop.f32.mrb[0].mxu0
        %1242 = vmatprep.mubr.bf16.mxu0 0
        %1243 = vmatmul.mubr.bf16.gmra.mrb[0].mxu0 %v1032
        %v1244 = vpop.f32.mrb[0].mxu0
        %v1245 = vadd.f32 %v1056, %v1244
        %v1246 = vpop.f32.mrb[0].mxu0
        %v1247 = vpop.f32.mrb[0].mxu0
        %v1248 = vadd.f32 %v1056, %v1247
        %v1249 = vpop.f32.mrb[0].mxu0
        %1250 = vmatprep.mubr.bf16.mxu0 0
        %1251 = vmatmul.mubr.bf16.gmra.mrb[0].mxu0 %v1033
        %v1252 = vpop.f32.mrb[0].mxu0
        %v1253 = vadd.f32 %v1056, %v1252
        %v1254 = vpop.f32.mrb[0].mxu0
        %v1255 = vpop.f32.mrb[0].mxu0
        %v1256 = vadd.f32 %v1056, %v1255
        %v1257 = vpop.f32.mrb[0].mxu0
        %1258 = vmatprep.mubr.bf16.mxu0 0
        %1259 = vmatmul.mubr.bf16.gmra.mrb[0].mxu0 %v1034
        %v1260 = vpop.f32.mrb[0].mxu0
        %v1261 = vadd.f32 %v1056, %v1260
        %v1262 = vpop.f32.mrb[0].mxu0
        %v1263 = vpop.f32.mrb[0].mxu0
        %v1264 = vadd.f32 %v1056, %v1263
        %v1265 = vpop.f32.mrb[0].mxu0
        %1266 = vdwg.mxu0
        %v1267 = vpack.c.bf16 %v1144, %v1141
        %v1268 = vpack.c.bf16 %v1152, %v1149
        %v1269 = vpack.c.bf16 %v1160, %v1157
        %v1270 = vpack.c.bf16 %v1168, %v1165
        %v1271 = vpack.c.bf16 %v1176, %v1173
        %v1272 = vpack.c.bf16 %v1184, %v1181
        %v1273 = vpack.c.bf16 %v1192, %v1189
        %v1274 = vpack.c.bf16 %v1200, %v1197
        %v1275 = vpack.c.bf16 %v1208, %v1205
        %v1276 = vpack.c.bf16 %v1216, %v1213
        %v1277 = vpack.c.bf16 %v1224, %v1221
        %v1278 = vpack.c.bf16 %v1232, %v1229
        %v1279 = vpack.c.bf16 %v1240, %v1237
        %v1280 = vpack.c.bf16 %v1248, %v1245
        %v1281 = vpack.c.bf16 %v1256, %v1253
        %v1282 = vpack.c.bf16 %v1264, %v1261
        %v1299 = vunpack.c.l.b16 %v1267
        %v1300 = vunpack.c.h.b16 %v1267
        %v1301 = vunpack.c.l.b16 %v1268
        %v1302 = vunpack.c.h.b16 %v1268
        %v1303 = vunpack.c.l.b16 %v1269
        %v1304 = vunpack.c.h.b16 %v1269
        %v1305 = vunpack.c.l.b16 %v1270
        %v1306 = vunpack.c.h.b16 %v1270
        %v1307 = vunpack.c.l.b16 %v1271
        %v1308 = vunpack.c.h.b16 %v1271
        %v1309 = vunpack.c.l.b16 %v1272
        %v1310 = vunpack.c.h.b16 %v1272
        %v1311 = vunpack.c.l.b16 %v1273
        %v1312 = vunpack.c.h.b16 %v1273
        %v1313 = vunpack.c.l.b16 %v1274
        %v1314 = vunpack.c.h.b16 %v1274
        %v1315 = vunpack.c.l.b16 %v1275
        %v1316 = vunpack.c.h.b16 %v1275
        %v1317 = vunpack.c.l.b16 %v1276
        %v1318 = vunpack.c.h.b16 %v1276
        %v1319 = vunpack.c.l.b16 %v1277
        %v1320 = vunpack.c.h.b16 %v1277
        %v1321 = vunpack.c.l.b16 %v1278
        %v1322 = vunpack.c.h.b16 %v1278
        %v1323 = vunpack.c.l.b16 %v1279
        %v1324 = vunpack.c.h.b16 %v1279
        %v1325 = vunpack.c.l.b16 %v1280
        %v1326 = vunpack.c.h.b16 %v1280
        %v1327 = vunpack.c.l.b16 %v1281
        %v1328 = vunpack.c.h.b16 %v1281
        %v1329 = vunpack.c.l.b16 %v1282
        %v1330 = vunpack.c.h.b16 %v1282
        %v1331 = vpack.c.b16 %v1299, %v1299
        %v1332 = vpack.c.b16 %v1300, %v1300
        %v1333 = vpack.c.b16 %v1301, %v1301
        %v1334 = vpack.c.b16 %v1302, %v1302
        %v1335 = vpack.c.b16 %v1303, %v1303
        %v1336 = vpack.c.b16 %v1304, %v1304
        %v1337 = vpack.c.b16 %v1305, %v1305
        %v1338 = vpack.c.b16 %v1306, %v1306
        %v1339 = vpack.c.b16 %v1307, %v1307
        %v1340 = vpack.c.b16 %v1308, %v1308
        %v1341 = vpack.c.b16 %v1309, %v1309
        %v1342 = vpack.c.b16 %v1310, %v1310
        %v1343 = vpack.c.b16 %v1311, %v1311
        %v1344 = vpack.c.b16 %v1312, %v1312
        %v1345 = vpack.c.b16 %v1313, %v1313
        %v1346 = vpack.c.b16 %v1314, %v1314
        %v1347 = vpack.c.b16 %v1315, %v1315
        %v1348 = vpack.c.b16 %v1316, %v1316
        %v1349 = vpack.c.b16 %v1317, %v1317
        %v1350 = vpack.c.b16 %v1318, %v1318
        %v1351 = vpack.c.b16 %v1319, %v1319
        %v1352 = vpack.c.b16 %v1320, %v1320
        %v1353 = vpack.c.b16 %v1321, %v1321
        %v1354 = vpack.c.b16 %v1322, %v1322
        %v1355 = vpack.c.b16 %v1323, %v1323
        %v1356 = vpack.c.b16 %v1324, %v1324
        %v1357 = vpack.c.b16 %v1325, %v1325
        %v1358 = vpack.c.b16 %v1326, %v1326
        %v1359 = vpack.c.b16 %v1327, %v1327
        %v1360 = vpack.c.b16 %v1328, %v1328
        %v1361 = vpack.c.b16 %v1329, %v1329
        %v1362 = vpack.c.b16 %v1330, %v1330
        %1395 = vst [vmem:[%s536] sm:$0xf] %v1331
        %1396 = vst [vmem:[%s536 + $0x4] sm:$0xf] %v1332
        %1397 = vst [vmem:[%s536 + $0x8] sm:$0xf] %v1333
        %1398 = vst [vmem:[%s536 + $0xc] sm:$0xf] %v1334
        %1399 = vst [vmem:[%s536 + $0x10] sm:$0xf] %v1335
        %1400 = vst [vmem:[%s536 + $0x14] sm:$0xf] %v1336
        %1401 = vst [vmem:[%s536 + $0x18] sm:$0xf] %v1337
        %1402 = vst [vmem:[%s536 + $0x1c] sm:$0xf] %v1338
        %1403 = vst [vmem:[%s536 + $0x20] sm:$0xf] %v1339
        %1404 = vst [vmem:[%s536 + $0x24] sm:$0xf] %v1340
        %1405 = vst [vmem:[%s536 + $0x28] sm:$0xf] %v1341
        %1406 = vst [vmem:[%s536 + $0x2c] sm:$0xf] %v1342
        %1407 = vst [vmem:[%s536 + $0x30] sm:$0xf] %v1343
        %1408 = vst [vmem:[%s536 + $0x34] sm:$0xf] %v1344
        %1409 = vst [vmem:[%s536 + $0x38] sm:$0xf] %v1345
        %1410 = vst [vmem:[%s536 + $0x3c] sm:$0xf] %v1346
        %1411 = vst [vmem:[%s536 + $0x40] sm:$0xf] %v1347
        %1412 = vst [vmem:[%s536 + $0x44] sm:$0xf] %v1348
        %1413 = vst [vmem:[%s536 + $0x48] sm:$0xf] %v1349
        %1414 = vst [vmem:[%s536 + $0x4c] sm:$0xf] %v1350
        %1415 = vst [vmem:[%s536 + $0x50] sm:$0xf] %v1351
        %1416 = vst [vmem:[%s536 + $0x54] sm:$0xf] %v1352
        %1417 = vst [vmem:[%s536 + $0x58] sm:$0xf] %v1353
        %1418 = vst [vmem:[%s536 + $0x5c] sm:$0xf] %v1354
        %1419 = vst [vmem:[%s536 + $0x60] sm:$0xf] %v1355
        %1420 = vst [vmem:[%s536 + $0x64] sm:$0xf] %v1356
        %1421 = vst [vmem:[%s536 + $0x68] sm:$0xf] %v1357
        %1422 = vst [vmem:[%s536 + $0x6c] sm:$0xf] %v1358
        %1423 = vst [vmem:[%s536 + $0x70] sm:$0xf] %v1359
        %1424 = vst [vmem:[%s536 + $0x74] sm:$0xf] %v1360
        %1425 = vst [vmem:[%s536 + $0x78] sm:$0xf] %v1361
        %1426 = vst [vmem:[%s536 + $0x7c] sm:$0xf] %v1362
        %v1427 = vld [vmem:[#allocation11] sm:$0xf]
        %v1428 = vld [vmem:[#allocation11 + $0x4] sm:$0xf]
        %v1429 = vld [vmem:[#allocation11 + $0x8] sm:$0xf]
        %v1430 = vld [vmem:[#allocation11 + $0xc] sm:$0xf]
        %v1431 = vld [vmem:[#allocation11 + $0x10] sm:$0xf]
        %v1432 = vld [vmem:[#allocation11 + $0x14] sm:$0xf]
        %v1433 = vld [vmem:[#allocation11 + $0x18] sm:$0xf]
        %v1434 = vld [vmem:[#allocation11 + $0x1c] sm:$0xf]
        %v1435 = vld [vmem:[#allocation11 + $0x20] sm:$0xf]
        %v1436 = vld [vmem:[#allocation11 + $0x24] sm:$0xf]
        %v1437 = vld [vmem:[#allocation11 + $0x28] sm:$0xf]
        %v1438 = vld [vmem:[#allocation11 + $0x2c] sm:$0xf]
        %v1439 = vld [vmem:[#allocation11 + $0x30] sm:$0xf]
        %v1440 = vld [vmem:[#allocation11 + $0x34] sm:$0xf]
        %v1441 = vld [vmem:[#allocation11 + $0x38] sm:$0xf]
        %v1442 = vld [vmem:[#allocation11 + $0x3c] sm:$0xf]
        %v1443 = vld [vmem:[#allocation13] sm:$0x1]
        %v1445 = vlaneseq
        %v1446 = vshrl.u32 %v1445, 7
        %v1447 = vsub.s32 0, %v1446
        %v1448 = vrot.slane %v1443, %v1447
        %v1466 = vunpack.c.l.b16 %v1427
        %v1467 = vunpack.c.l.b16 %v1428
        %v1468 = vunpack.c.l.b16 %v1429
        %v1469 = vunpack.c.l.b16 %v1430
        %v1470 = vunpack.c.l.b16 %v1431
        %v1471 = vunpack.c.l.b16 %v1432
        %v1472 = vunpack.c.l.b16 %v1433
        %v1473 = vunpack.c.l.b16 %v1434
        %v1474 = vunpack.c.l.b16 %v1435
        %v1475 = vunpack.c.l.b16 %v1436
        %v1476 = vunpack.c.l.b16 %v1437
        %v1477 = vunpack.c.l.b16 %v1438
        %v1478 = vunpack.c.l.b16 %v1439
        %v1479 = vunpack.c.l.b16 %v1440
        %v1480 = vunpack.c.l.b16 %v1441
        %v1481 = vunpack.c.l.b16 %v1442
        %v1482 = vpack.c.b16 %v1467, %v1466
        %v1483 = vpack.c.b16 %v1469, %v1468
        %v1484 = vpack.c.b16 %v1471, %v1470
        %v1485 = vpack.c.b16 %v1473, %v1472
        %v1486 = vpack.c.b16 %v1475, %v1474
        %v1487 = vpack.c.b16 %v1477, %v1476
        %v1488 = vpack.c.b16 %v1479, %v1478
        %v1489 = vpack.c.b16 %v1481, %v1480
        %1498 = vmatprep.subr.bf16.mxu0 0
        %1499 = vmatpush1.bf16.msra.mxu0 %v1482
        %1500 = vmatprep.subr.bf16.mxu0 0
        %1501 = vmatpush1.bf16.msra.mxu0 %v1483
        %1502 = vmatprep.subr.bf16.mxu0 0
        %1503 = vmatpush1.bf16.msra.mxu0 %v1484
        %1504 = vmatprep.subr.bf16.mxu0 0
        %1505 = vmatpush1.bf16.msra.mxu0 %v1485
        %1506 = vmatprep.subr.bf16.mxu0 0
        %1507 = vmatpush1.bf16.msra.mxu0 %v1486
        %1508 = vmatprep.subr.bf16.mxu0 0
        %1509 = vmatpush1.bf16.msra.mxu0 %v1487
        %1510 = vmatprep.subr.bf16.mxu0 0
        %1511 = vmatpush1.bf16.msra.mxu0 %v1488
        %1512 = vmatprep.subr.bf16.mxu0 0
        %1513 = vmatpush1.bf16.msra.mxu0 %v1489
        %1514 = vmatprep.subr.bf16.mxu0 0
        %1515 = vmatpush1.bf16.msra.mxu0 0
        %1516 = vmatprep.subr.bf16.mxu0 0
        %1517 = vmatpush1.bf16.msra.mxu0 0
        %1518 = vmatprep.subr.bf16.mxu0 0
        %1519 = vmatpush1.bf16.msra.mxu0 0
        %1520 = vmatprep.subr.bf16.mxu0 0
        %1521 = vmatpush1.bf16.msra.mxu0 0
        %1522 = vmatprep.subr.bf16.mxu0 0
        %1523 = vmatpush1.bf16.msra.mxu0 0
        %1524 = vmatprep.subr.bf16.mxu0 0
        %1525 = vmatpush1.bf16.msra.mxu0 0
        %1526 = vmatprep.subr.bf16.mxu0 0
        %1527 = vmatpush1.bf16.msra.mxu0 0
        %1528 = vmatprep.subr.bf16.mxu0 0
        %1529 = vmatpush1.bf16.msra.mxu0 0
        %1530 = vmatprep.mubr.bf16.mxu0 0
        %1531 = vmatmul.mubr.bf16.gmra.mrb[0].mxu0 %v1019
        %v1532 = vpop.f32.mrb[0].mxu0
        %v1533 = vadd.f32 %v1448, %v1532
        %v1534 = vpop.f32.mrb[0].mxu0
        %v1535 = vpop.f32.mrb[0].mxu0
        %v1536 = vadd.f32 %v1448, %v1535
        %v1537 = vpop.f32.mrb[0].mxu0
        %1538 = vmatprep.mubr.bf16.mxu0 0
        %1539 = vmatmul.mubr.bf16.gmra.mrb[0].mxu0 %v1020
        %v1540 = vpop.f32.mrb[0].mxu0
        %v1541 = vadd.f32 %v1448, %v1540
        %v1542 = vpop.f32.mrb[0].mxu0
        %v1543 = vpop.f32.mrb[0].mxu0
        %v1544 = vadd.f32 %v1448, %v1543
        %v1545 = vpop.f32.mrb[0].mxu0
        %1546 = vmatprep.mubr.bf16.mxu0 0
        %1547 = vmatmul.mubr.bf16.gmra.mrb[0].mxu0 %v1021
        %v1548 = vpop.f32.mrb[0].mxu0
        %v1549 = vadd.f32 %v1448, %v1548
        %v1550 = vpop.f32.mrb[0].mxu0
        %v1551 = vpop.f32.mrb[0].mxu0
        %v1552 = vadd.f32 %v1448, %v1551
        %v1553 = vpop.f32.mrb[0].mxu0
        %1554 = vmatprep.mubr.bf16.mxu0 0
        %1555 = vmatmul.mubr.bf16.gmra.mrb[0].mxu0 %v1022
        %v1556 = vpop.f32.mrb[0].mxu0
        %v1557 = vadd.f32 %v1448, %v1556
        %v1558 = vpop.f32.mrb[0].mxu0
        %v1559 = vpop.f32.mrb[0].mxu0
        %v1560 = vadd.f32 %v1448, %v1559
        %v1561 = vpop.f32.mrb[0].mxu0
        %1562 = vmatprep.mubr.bf16.mxu0 0
        %1563 = vmatmul.mubr.bf16.gmra.mrb[0].mxu0 %v1023
        %v1564 = vpop.f32.mrb[0].mxu0
        %v1565 = vadd.f32 %v1448, %v1564
        %v1566 = vpop.f32.mrb[0].mxu0
        %v1567 = vpop.f32.mrb[0].mxu0
        %v1568 = vadd.f32 %v1448, %v1567
        %v1569 = vpop.f32.mrb[0].mxu0
        %1570 = vmatprep.mubr.bf16.mxu0 0
        %1571 = vmatmul.mubr.bf16.gmra.mrb[0].mxu0 %v1024
        %v1572 = vpop.f32.mrb[0].mxu0
        %v1573 = vadd.f32 %v1448, %v1572
        %v1574 = vpop.f32.mrb[0].mxu0
        %v1575 = vpop.f32.mrb[0].mxu0
        %v1576 = vadd.f32 %v1448, %v1575
        %v1577 = vpop.f32.mrb[0].mxu0
        %1578 = vmatprep.mubr.bf16.mxu0 0
        %1579 = vmatmul.mubr.bf16.gmra.mrb[0].mxu0 %v1025
        %v1580 = vpop.f32.mrb[0].mxu0
        %v1581 = vadd.f32 %v1448, %v1580
        %v1582 = vpop.f32.mrb[0].mxu0
        %v1583 = vpop.f32.mrb[0].mxu0
        %v1584 = vadd.f32 %v1448, %v1583
        %v1585 = vpop.f32.mrb[0].mxu0
        %1586 = vmatprep.mubr.bf16.mxu0 0
        %1587 = vmatmul.mubr.bf16.gmra.mrb[0].mxu0 %v1026
        %v1588 = vpop.f32.mrb[0].mxu0
        %v1589 = vadd.f32 %v1448, %v1588
        %v1590 = vpop.f32.mrb[0].mxu0
        %v1591 = vpop.f32.mrb[0].mxu0
        %v1592 = vadd.f32 %v1448, %v1591
        %v1593 = vpop.f32.mrb[0].mxu0
        %1594 = vmatprep.mubr.bf16.mxu0 0
        %1595 = vmatmul.mubr.bf16.gmra.mrb[0].mxu0 %v1027
        %v1596 = vpop.f32.mrb[0].mxu0
        %v1597 = vadd.f32 %v1448, %v1596
        %v1598 = vpop.f32.mrb[0].mxu0
        %v1599 = vpop.f32.mrb[0].mxu0
        %v1600 = vadd.f32 %v1448, %v1599
        %v1601 = vpop.f32.mrb[0].mxu0
        %1602 = vmatprep.mubr.bf16.mxu0 0
        %1603 = vmatmul.mubr.bf16.gmra.mrb[0].mxu0 %v1028
        %v1604 = vpop.f32.mrb[0].mxu0
        %v1605 = vadd.f32 %v1448, %v1604
        %v1606 = vpop.f32.mrb[0].mxu0
        %v1607 = vpop.f32.mrb[0].mxu0
        %v1608 = vadd.f32 %v1448, %v1607
        %v1609 = vpop.f32.mrb[0].mxu0
        %1610 = vmatprep.mubr.bf16.mxu0 0
        %1611 = vmatmul.mubr.bf16.gmra.mrb[0].mxu0 %v1029
        %v1612 = vpop.f32.mrb[0].mxu0
        %v1613 = vadd.f32 %v1448, %v1612
        %v1614 = vpop.f32.mrb[0].mxu0
        %v1615 = vpop.f32.mrb[0].mxu0
        %v1616 = vadd.f32 %v1448, %v1615
        %v1617 = vpop.f32.mrb[0].mxu0
        %1618 = vmatprep.mubr.bf16.mxu0 0
        %1619 = vmatmul.mubr.bf16.gmra.mrb[0].mxu0 %v1030
        %v1620 = vpop.f32.mrb[0].mxu0
        %v1621 = vadd.f32 %v1448, %v1620
        %v1622 = vpop.f32.mrb[0].mxu0
        %v1623 = vpop.f32.mrb[0].mxu0
        %v1624 = vadd.f32 %v1448, %v1623
        %v1625 = vpop.f32.mrb[0].mxu0
        %1626 = vmatprep.mubr.bf16.mxu0 0
        %1627 = vmatmul.mubr.bf16.gmra.mrb[0].mxu0 %v1031
        %v1628 = vpop.f32.mrb[0].mxu0
        %v1629 = vadd.f32 %v1448, %v1628
        %v1630 = vpop.f32.mrb[0].mxu0
        %v1631 = vpop.f32.mrb[0].mxu0
        %v1632 = vadd.f32 %v1448, %v1631
        %v1633 = vpop.f32.mrb[0].mxu0
        %1634 = vmatprep.mubr.bf16.mxu0 0
        %1635 = vmatmul.mubr.bf16.gmra.mrb[0].mxu0 %v1032
        %v1636 = vpop.f32.mrb[0].mxu0
        %v1637 = vadd.f32 %v1448, %v1636
        %v1638 = vpop.f32.mrb[0].mxu0
        %v1639 = vpop.f32.mrb[0].mxu0
        %v1640 = vadd.f32 %v1448, %v1639
        %v1641 = vpop.f32.mrb[0].mxu0
        %1642 = vmatprep.mubr.bf16.mxu0 0
        %1643 = vmatmul.mubr.bf16.gmra.mrb[0].mxu0 %v1033
        %v1644 = vpop.f32.mrb[0].mxu0
        %v1645 = vadd.f32 %v1448, %v1644
        %v1646 = vpop.f32.mrb[0].mxu0
        %v1647 = vpop.f32.mrb[0].mxu0
        %v1648 = vadd.f32 %v1448, %v1647
        %v1649 = vpop.f32.mrb[0].mxu0
        %1650 = vmatprep.mubr.bf16.mxu0 0
        %1651 = vmatmul.mubr.bf16.gmra.mrb[0].mxu0 %v1034
        %v1652 = vpop.f32.mrb[0].mxu0
        %v1653 = vadd.f32 %v1448, %v1652
        %v1654 = vpop.f32.mrb[0].mxu0
        %v1655 = vpop.f32.mrb[0].mxu0
        %v1656 = vadd.f32 %v1448, %v1655
        %v1657 = vpop.f32.mrb[0].mxu0
        %1658 = vdwg.mxu0
        %v1659 = vpack.c.bf16 %v1536, %v1533
        %v1660 = vpack.c.bf16 %v1544, %v1541
        %v1661 = vpack.c.bf16 %v1552, %v1549
        %v1662 = vpack.c.bf16 %v1560, %v1557
        %v1663 = vpack.c.bf16 %v1568, %v1565
        %v1664 = vpack.c.bf16 %v1576, %v1573
        %v1665 = vpack.c.bf16 %v1584, %v1581
        %v1666 = vpack.c.bf16 %v1592, %v1589
        %v1667 = vpack.c.bf16 %v1600, %v1597
        %v1668 = vpack.c.bf16 %v1608, %v1605
        %v1669 = vpack.c.bf16 %v1616, %v1613
        %v1670 = vpack.c.bf16 %v1624, %v1621
        %v1671 = vpack.c.bf16 %v1632, %v1629
        %v1672 = vpack.c.bf16 %v1640, %v1637
        %v1673 = vpack.c.bf16 %v1648, %v1645
        %v1674 = vpack.c.bf16 %v1656, %v1653
        %v1691 = vunpack.c.l.b16 %v1659
        %v1692 = vunpack.c.h.b16 %v1659
        %v1693 = vunpack.c.l.b16 %v1660
        %v1694 = vunpack.c.h.b16 %v1660
        %v1695 = vunpack.c.l.b16 %v1661
        %v1696 = vunpack.c.h.b16 %v1661
        %v1697 = vunpack.c.l.b16 %v1662
        %v1698 = vunpack.c.h.b16 %v1662
        %v1699 = vunpack.c.l.b16 %v1663
        %v1700 = vunpack.c.h.b16 %v1663
        %v1701 = vunpack.c.l.b16 %v1664
        %v1702 = vunpack.c.h.b16 %v1664
        %v1703 = vunpack.c.l.b16 %v1665
        %v1704 = vunpack.c.h.b16 %v1665
        %v1705 = vunpack.c.l.b16 %v1666
        %v1706 = vunpack.c.h.b16 %v1666
        %v1707 = vunpack.c.l.b16 %v1667
        %v1708 = vunpack.c.h.b16 %v1667
        %v1709 = vunpack.c.l.b16 %v1668
        %v1710 = vunpack.c.h.b16 %v1668
        %v1711 = vunpack.c.l.b16 %v1669
        %v1712 = vunpack.c.h.b16 %v1669
        %v1713 = vunpack.c.l.b16 %v1670
        %v1714 = vunpack.c.h.b16 %v1670
        %v1715 = vunpack.c.l.b16 %v1671
        %v1716 = vunpack.c.h.b16 %v1671
        %v1717 = vunpack.c.l.b16 %v1672
        %v1718 = vunpack.c.h.b16 %v1672
        %v1719 = vunpack.c.l.b16 %v1673
        %v1720 = vunpack.c.h.b16 %v1673
        %v1721 = vunpack.c.l.b16 %v1674
        %v1722 = vunpack.c.h.b16 %v1674
        %v1723 = vpack.c.b16 %v1691, %v1691
        %v1724 = vpack.c.b16 %v1692, %v1692
        %v1725 = vpack.c.b16 %v1693, %v1693
        %v1726 = vpack.c.b16 %v1694, %v1694
        %v1727 = vpack.c.b16 %v1695, %v1695
        %v1728 = vpack.c.b16 %v1696, %v1696
        %v1729 = vpack.c.b16 %v1697, %v1697
        %v1730 = vpack.c.b16 %v1698, %v1698
        %v1731 = vpack.c.b16 %v1699, %v1699
        %v1732 = vpack.c.b16 %v1700, %v1700
        %v1733 = vpack.c.b16 %v1701, %v1701
        %v1734 = vpack.c.b16 %v1702, %v1702
        %v1735 = vpack.c.b16 %v1703, %v1703
        %v1736 = vpack.c.b16 %v1704, %v1704
        %v1737 = vpack.c.b16 %v1705, %v1705
        %v1738 = vpack.c.b16 %v1706, %v1706
        %v1739 = vpack.c.b16 %v1707, %v1707
        %v1740 = vpack.c.b16 %v1708, %v1708
        %v1741 = vpack.c.b16 %v1709, %v1709
        %v1742 = vpack.c.b16 %v1710, %v1710
        %v1743 = vpack.c.b16 %v1711, %v1711
        %v1744 = vpack.c.b16 %v1712, %v1712
        %v1745 = vpack.c.b16 %v1713, %v1713
        %v1746 = vpack.c.b16 %v1714, %v1714
        %v1747 = vpack.c.b16 %v1715, %v1715
        %v1748 = vpack.c.b16 %v1716, %v1716
        %v1749 = vpack.c.b16 %v1717, %v1717
        %v1750 = vpack.c.b16 %v1718, %v1718
        %v1751 = vpack.c.b16 %v1719, %v1719
        %v1752 = vpack.c.b16 %v1720, %v1720
        %v1753 = vpack.c.b16 %v1721, %v1721
        %v1754 = vpack.c.b16 %v1722, %v1722
        %1787 = vst [vmem:[%s543] sm:$0xf] %v1723
        %1788 = vst [vmem:[%s543 + $0x4] sm:$0xf] %v1724
        %1789 = vst [vmem:[%s543 + $0x8] sm:$0xf] %v1725
        %1790 = vst [vmem:[%s543 + $0xc] sm:$0xf] %v1726
        %1791 = vst [vmem:[%s543 + $0x10] sm:$0xf] %v1727
        %1792 = vst [vmem:[%s543 + $0x14] sm:$0xf] %v1728
        %1793 = vst [vmem:[%s543 + $0x18] sm:$0xf] %v1729
        %1794 = vst [vmem:[%s543 + $0x1c] sm:$0xf] %v1730
        %1795 = vst [vmem:[%s543 + $0x20] sm:$0xf] %v1731
        %1796 = vst [vmem:[%s543 + $0x24] sm:$0xf] %v1732
        %1797 = vst [vmem:[%s543 + $0x28] sm:$0xf] %v1733
        %1798 = vst [vmem:[%s543 + $0x2c] sm:$0xf] %v1734
        %1799 = vst [vmem:[%s543 + $0x30] sm:$0xf] %v1735
        %1800 = vst [vmem:[%s543 + $0x34] sm:$0xf] %v1736
        %1801 = vst [vmem:[%s543 + $0x38] sm:$0xf] %v1737
        %1802 = vst [vmem:[%s543 + $0x3c] sm:$0xf] %v1738
        %1803 = vst [vmem:[%s543 + $0x40] sm:$0xf] %v1739
        %1804 = vst [vmem:[%s543 + $0x44] sm:$0xf] %v1740
        %1805 = vst [vmem:[%s543 + $0x48] sm:$0xf] %v1741
        %1806 = vst [vmem:[%s543 + $0x4c] sm:$0xf] %v1742
        %1807 = vst [vmem:[%s543 + $0x50] sm:$0xf] %v1743
        %1808 = vst [vmem:[%s543 + $0x54] sm:$0xf] %v1744
        %1809 = vst [vmem:[%s543 + $0x58] sm:$0xf] %v1745
        %1810 = vst [vmem:[%s543 + $0x5c] sm:$0xf] %v1746
        %1811 = vst [vmem:[%s543 + $0x60] sm:$0xf] %v1747
        %1812 = vst [vmem:[%s543 + $0x64] sm:$0xf] %v1748
        %1813 = vst [vmem:[%s543 + $0x68] sm:$0xf] %v1749
        %1814 = vst [vmem:[%s543 + $0x6c] sm:$0xf] %v1750
        %1815 = vst [vmem:[%s543 + $0x70] sm:$0xf] %v1751
        %1816 = vst [vmem:[%s543 + $0x74] sm:$0xf] %v1752
        %1817 = vst [vmem:[%s543 + $0x78] sm:$0xf] %v1753
        %1818 = vst [vmem:[%s543 + $0x7c] sm:$0xf] %v1754
        %v1819 = vld [vmem:[#allocation14] sm:$0xf]
        %v1820 = vld [vmem:[#allocation14 + $0x4] sm:$0xf]
        %v1821 = vld [vmem:[#allocation14 + $0x8] sm:$0xf]
        %v1822 = vld [vmem:[#allocation14 + $0xc] sm:$0xf]
        %v1823 = vld [vmem:[#allocation14 + $0x10] sm:$0xf]
        %v1824 = vld [vmem:[#allocation14 + $0x14] sm:$0xf]
        %v1825 = vld [vmem:[#allocation14 + $0x18] sm:$0xf]
        %v1826 = vld [vmem:[#allocation14 + $0x1c] sm:$0xf]
        %v1827 = vld [vmem:[#allocation14 + $0x20] sm:$0xf]
        %v1828 = vld [vmem:[#allocation14 + $0x24] sm:$0xf]
        %v1829 = vld [vmem:[#allocation14 + $0x28] sm:$0xf]
        %v1830 = vld [vmem:[#allocation14 + $0x2c] sm:$0xf]
        %v1831 = vld [vmem:[#allocation14 + $0x30] sm:$0xf]
        %v1832 = vld [vmem:[#allocation14 + $0x34] sm:$0xf]
        %v1833 = vld [vmem:[#allocation14 + $0x38] sm:$0xf]
        %v1834 = vld [vmem:[#allocation14 + $0x3c] sm:$0xf]
        %v1835 = vld [vmem:[#allocation16] sm:$0x1]
        %v1837 = vlaneseq
        %v1838 = vshrl.u32 %v1837, 7
        %v1839 = vsub.s32 0, %v1838
        %v1840 = vrot.slane %v1835, %v1839
        %v1858 = vunpack.c.l.b16 %v1819
        %v1859 = vunpack.c.l.b16 %v1820
        %v1860 = vunpack.c.l.b16 %v1821
        %v1861 = vunpack.c.l.b16 %v1822
        %v1862 = vunpack.c.l.b16 %v1823
        %v1863 = vunpack.c.l.b16 %v1824
        %v1864 = vunpack.c.l.b16 %v1825
        %v1865 = vunpack.c.l.b16 %v1826
        %v1866 = vunpack.c.l.b16 %v1827
        %v1867 = vunpack.c.l.b16 %v1828
        %v1868 = vunpack.c.l.b16 %v1829
        %v1869 = vunpack.c.l.b16 %v1830
        %v1870 = vunpack.c.l.b16 %v1831
        %v1871 = vunpack.c.l.b16 %v1832
        %v1872 = vunpack.c.l.b16 %v1833
        %v1873 = vunpack.c.l.b16 %v1834
        %v1874 = vpack.c.b16 %v1859, %v1858
        %v1875 = vpack.c.b16 %v1861, %v1860
        %v1876 = vpack.c.b16 %v1863, %v1862
        %v1877 = vpack.c.b16 %v1865, %v1864
        %v1878 = vpack.c.b16 %v1867, %v1866
        %v1879 = vpack.c.b16 %v1869, %v1868
        %v1880 = vpack.c.b16 %v1871, %v1870
        %v1881 = vpack.c.b16 %v1873, %v1872
        %1890 = vmatprep.subr.bf16.mxu0 0
        %1891 = vmatpush1.bf16.msra.mxu0 %v1874
        %1892 = vmatprep.subr.bf16.mxu0 0
        %1893 = vmatpush1.bf16.msra.mxu0 %v1875
        %1894 = vmatprep.subr.bf16.mxu0 0
        %1895 = vmatpush1.bf16.msra.mxu0 %v1876
        %1896 = vmatprep.subr.bf16.mxu0 0
        %1897 = vmatpush1.bf16.msra.mxu0 %v1877
        %1898 = vmatprep.subr.bf16.mxu0 0
        %1899 = vmatpush1.bf16.msra.mxu0 %v1878
        %1900 = vmatprep.subr.bf16.mxu0 0
        %1901 = vmatpush1.bf16.msra.mxu0 %v1879
        %1902 = vmatprep.subr.bf16.mxu0 0
        %1903 = vmatpush1.bf16.msra.mxu0 %v1880
        %1904 = vmatprep.subr.bf16.mxu0 0
        %1905 = vmatpush1.bf16.msra.mxu0 %v1881
        %1906 = vmatprep.subr.bf16.mxu0 0
        %1907 = vmatpush1.bf16.msra.mxu0 0
        %1908 = vmatprep.subr.bf16.mxu0 0
        %1909 = vmatpush1.bf16.msra.mxu0 0
        %1910 = vmatprep.subr.bf16.mxu0 0
        %1911 = vmatpush1.bf16.msra.mxu0 0
        %1912 = vmatprep.subr.bf16.mxu0 0
        %1913 = vmatpush1.bf16.msra.mxu0 0
        %1914 = vmatprep.subr.bf16.mxu0 0
        %1915 = vmatpush1.bf16.msra.mxu0 0
        %1916 = vmatprep.subr.bf16.mxu0 0
        %1917 = vmatpush1.bf16.msra.mxu0 0
        %1918 = vmatprep.subr.bf16.mxu0 0
        %1919 = vmatpush1.bf16.msra.mxu0 0
        %1920 = vmatprep.subr.bf16.mxu0 0
        %1921 = vmatpush1.bf16.msra.mxu0 0
        %1922 = vmatprep.mubr.bf16.mxu0 0
        %1923 = vmatmul.mubr.bf16.gmra.mrb[0].mxu0 %v1019
        %v1924 = vpop.f32.mrb[0].mxu0
        %v1925 = vadd.f32 %v1840, %v1924
        %v1926 = vpop.f32.mrb[0].mxu0
        %v1927 = vpop.f32.mrb[0].mxu0
        %v1928 = vadd.f32 %v1840, %v1927
        %v1929 = vpop.f32.mrb[0].mxu0
        %1930 = vmatprep.mubr.bf16.mxu0 0
        %1931 = vmatmul.mubr.bf16.gmra.mrb[0].mxu0 %v1020
        %v1932 = vpop.f32.mrb[0].mxu0
        %v1933 = vadd.f32 %v1840, %v1932
        %v1934 = vpop.f32.mrb[0].mxu0
        %v1935 = vpop.f32.mrb[0].mxu0
        %v1936 = vadd.f32 %v1840, %v1935
        %v1937 = vpop.f32.mrb[0].mxu0
        %1938 = vmatprep.mubr.bf16.mxu0 0
        %1939 = vmatmul.mubr.bf16.gmra.mrb[0].mxu0 %v1021
        %v1940 = vpop.f32.mrb[0].mxu0
        %v1941 = vadd.f32 %v1840, %v1940
        %v1942 = vpop.f32.mrb[0].mxu0
        %v1943 = vpop.f32.mrb[0].mxu0
        %v1944 = vadd.f32 %v1840, %v1943
        %v1945 = vpop.f32.mrb[0].mxu0
        %1946 = vmatprep.mubr.bf16.mxu0 0
        %1947 = vmatmul.mubr.bf16.gmra.mrb[0].mxu0 %v1022
        %v1948 = vpop.f32.mrb[0].mxu0
        %v1949 = vadd.f32 %v1840, %v1948
        %v1950 = vpop.f32.mrb[0].mxu0
        %v1951 = vpop.f32.mrb[0].mxu0
        %v1952 = vadd.f32 %v1840, %v1951
        %v1953 = vpop.f32.mrb[0].mxu0
        %1954 = vmatprep.mubr.bf16.mxu0 0
        %1955 = vmatmul.mubr.bf16.gmra.mrb[0].mxu0 %v1023
        %v1956 = vpop.f32.mrb[0].mxu0
        %v1957 = vadd.f32 %v1840, %v1956
        %v1958 = vpop.f32.mrb[0].mxu0
        %v1959 = vpop.f32.mrb[0].mxu0
        %v1960 = vadd.f32 %v1840, %v1959
        %v1961 = vpop.f32.mrb[0].mxu0
        %1962 = vmatprep.mubr.bf16.mxu0 0
        %1963 = vmatmul.mubr.bf16.gmra.mrb[0].mxu0 %v1024
        %v1964 = vpop.f32.mrb[0].mxu0
        %v1965 = vadd.f32 %v1840, %v1964
        %v1966 = vpop.f32.mrb[0].mxu0
        %v1967 = vpop.f32.mrb[0].mxu0
        %v1968 = vadd.f32 %v1840, %v1967
        %v1969 = vpop.f32.mrb[0].mxu0
        %1970 = vmatprep.mubr.bf16.mxu0 0
        %1971 = vmatmul.mubr.bf16.gmra.mrb[0].mxu0 %v1025
        %v1972 = vpop.f32.mrb[0].mxu0
        %v1973 = vadd.f32 %v1840, %v1972
        %v1974 = vpop.f32.mrb[0].mxu0
        %v1975 = vpop.f32.mrb[0].mxu0
        %v1976 = vadd.f32 %v1840, %v1975
        %v1977 = vpop.f32.mrb[0].mxu0
        %1978 = vmatprep.mubr.bf16.mxu0 0
        %1979 = vmatmul.mubr.bf16.gmra.mrb[0].mxu0 %v1026
        %v1980 = vpop.f32.mrb[0].mxu0
        %v1981 = vadd.f32 %v1840, %v1980
        %v1982 = vpop.f32.mrb[0].mxu0
        %v1983 = vpop.f32.mrb[0].mxu0
        %v1984 = vadd.f32 %v1840, %v1983
        %v1985 = vpop.f32.mrb[0].mxu0
        %1986 = vmatprep.mubr.bf16.mxu0 0
        %1987 = vmatmul.mubr.bf16.gmra.mrb[0].mxu0 %v1027
        %v1988 = vpop.f32.mrb[0].mxu0
        %v1989 = vadd.f32 %v1840, %v1988
        %v1990 = vpop.f32.mrb[0].mxu0
        %v1991 = vpop.f32.mrb[0].mxu0
        %v1992 = vadd.f32 %v1840, %v1991
        %v1993 = vpop.f32.mrb[0].mxu0
        %1994 = vmatprep.mubr.bf16.mxu0 0
        %1995 = vmatmul.mubr.bf16.gmra.mrb[0].mxu0 %v1028
        %v1996 = vpop.f32.mrb[0].mxu0
        %v1997 = vadd.f32 %v1840, %v1996
        %v1998 = vpop.f32.mrb[0].mxu0
        %v1999 = vpop.f32.mrb[0].mxu0
        %v2000 = vadd.f32 %v1840, %v1999
        %v2001 = vpop.f32.mrb[0].mxu0
        %2002 = vmatprep.mubr.bf16.mxu0 0
        %2003 = vmatmul.mubr.bf16.gmra.mrb[0].mxu0 %v1029
        %v2004 = vpop.f32.mrb[0].mxu0
        %v2005 = vadd.f32 %v1840, %v2004
        %v2006 = vpop.f32.mrb[0].mxu0
        %v2007 = vpop.f32.mrb[0].mxu0
        %v2008 = vadd.f32 %v1840, %v2007
        %v2009 = vpop.f32.mrb[0].mxu0
        %2010 = vmatprep.mubr.bf16.mxu0 0
        %2011 = vmatmul.mubr.bf16.gmra.mrb[0].mxu0 %v1030
        %v2012 = vpop.f32.mrb[0].mxu0
        %v2013 = vadd.f32 %v1840, %v2012
        %v2014 = vpop.f32.mrb[0].mxu0
        %v2015 = vpop.f32.mrb[0].mxu0
        %v2016 = vadd.f32 %v1840, %v2015
        %v2017 = vpop.f32.mrb[0].mxu0
        %2018 = vmatprep.mubr.bf16.mxu0 0
        %2019 = vmatmul.mubr.bf16.gmra.mrb[0].mxu0 %v1031
        %v2020 = vpop.f32.mrb[0].mxu0
        %v2021 = vadd.f32 %v1840, %v2020
        %v2022 = vpop.f32.mrb[0].mxu0
        %v2023 = vpop.f32.mrb[0].mxu0
        %v2024 = vadd.f32 %v1840, %v2023
        %v2025 = vpop.f32.mrb[0].mxu0
        %2026 = vmatprep.mubr.bf16.mxu0 0
        %2027 = vmatmul.mubr.bf16.gmra.mrb[0].mxu0 %v1032
        %v2028 = vpop.f32.mrb[0].mxu0
        %v2029 = vadd.f32 %v1840, %v2028
        %v2030 = vpop.f32.mrb[0].mxu0
        %v2031 = vpop.f32.mrb[0].mxu0
        %v2032 = vadd.f32 %v1840, %v2031
        %v2033 = vpop.f32.mrb[0].mxu0
        %2034 = vmatprep.mubr.bf16.mxu0 0
        %2035 = vmatmul.mubr.bf16.gmra.mrb[0].mxu0 %v1033
        %v2036 = vpop.f32.mrb[0].mxu0
        %v2037 = vadd.f32 %v1840, %v2036
        %v2038 = vpop.f32.mrb[0].mxu0
        %v2039 = vpop.f32.mrb[0].mxu0
        %v2040 = vadd.f32 %v1840, %v2039
        %v2041 = vpop.f32.mrb[0].mxu0
        %2042 = vmatprep.mubr.bf16.mxu0 0
        %2043 = vmatmul.mubr.bf16.gmra.mrb[0].mxu0 %v1034
        %v2044 = vpop.f32.mrb[0].mxu0
        %v2045 = vadd.f32 %v1840, %v2044
        %v2046 = vpop.f32.mrb[0].mxu0
        %v2047 = vpop.f32.mrb[0].mxu0
        %v2048 = vadd.f32 %v1840, %v2047
        %v2049 = vpop.f32.mrb[0].mxu0
        %2050 = vdwg.mxu0
        %v2051 = vpack.c.bf16 %v1928, %v1925
        %v2052 = vpack.c.bf16 %v1936, %v1933
        %v2053 = vpack.c.bf16 %v1944, %v1941
        %v2054 = vpack.c.bf16 %v1952, %v1949
        %v2055 = vpack.c.bf16 %v1960, %v1957
        %v2056 = vpack.c.bf16 %v1968, %v1965
        %v2057 = vpack.c.bf16 %v1976, %v1973
        %v2058 = vpack.c.bf16 %v1984, %v1981
        %v2059 = vpack.c.bf16 %v1992, %v1989
        %v2060 = vpack.c.bf16 %v2000, %v1997
        %v2061 = vpack.c.bf16 %v2008, %v2005
        %v2062 = vpack.c.bf16 %v2016, %v2013
        %v2063 = vpack.c.bf16 %v2024, %v2021
        %v2064 = vpack.c.bf16 %v2032, %v2029
        %v2065 = vpack.c.bf16 %v2040, %v2037
        %v2066 = vpack.c.bf16 %v2048, %v2045
        %v2083 = vunpack.c.l.b16 %v2051
        %v2084 = vunpack.c.h.b16 %v2051
        %v2085 = vunpack.c.l.b16 %v2052
        %v2086 = vunpack.c.h.b16 %v2052
        %v2087 = vunpack.c.l.b16 %v2053
        %v2088 = vunpack.c.h.b16 %v2053
        %v2089 = vunpack.c.l.b16 %v2054
        %v2090 = vunpack.c.h.b16 %v2054
        %v2091 = vunpack.c.l.b16 %v2055
        %v2092 = vunpack.c.h.b16 %v2055
        %v2093 = vunpack.c.l.b16 %v2056
        %v2094 = vunpack.c.h.b16 %v2056
        %v2095 = vunpack.c.l.b16 %v2057
        %v2096 = vunpack.c.h.b16 %v2057
        %v2097 = vunpack.c.l.b16 %v2058
        %v2098 = vunpack.c.h.b16 %v2058
        %v2099 = vunpack.c.l.b16 %v2059
        %v2100 = vunpack.c.h.b16 %v2059
        %v2101 = vunpack.c.l.b16 %v2060
        %v2102 = vunpack.c.h.b16 %v2060
        %v2103 = vunpack.c.l.b16 %v2061
        %v2104 = vunpack.c.h.b16 %v2061
        %v2105 = vunpack.c.l.b16 %v2062
        %v2106 = vunpack.c.h.b16 %v2062
        %v2107 = vunpack.c.l.b16 %v2063
        %v2108 = vunpack.c.h.b16 %v2063
        %v2109 = vunpack.c.l.b16 %v2064
        %v2110 = vunpack.c.h.b16 %v2064
        %v2111 = vunpack.c.l.b16 %v2065
        %v2112 = vunpack.c.h.b16 %v2065
        %v2113 = vunpack.c.l.b16 %v2066
        %v2114 = vunpack.c.h.b16 %v2066
        %v2115 = vpack.c.b16 %v2083, %v2083
        %v2116 = vpack.c.b16 %v2084, %v2084
        %v2117 = vpack.c.b16 %v2085, %v2085
        %v2118 = vpack.c.b16 %v2086, %v2086
        %v2119 = vpack.c.b16 %v2087, %v2087
        %v2120 = vpack.c.b16 %v2088, %v2088
        %v2121 = vpack.c.b16 %v2089, %v2089
        %v2122 = vpack.c.b16 %v2090, %v2090
        %v2123 = vpack.c.b16 %v2091, %v2091
        %v2124 = vpack.c.b16 %v2092, %v2092
        %v2125 = vpack.c.b16 %v2093, %v2093
        %v2126 = vpack.c.b16 %v2094, %v2094
        %v2127 = vpack.c.b16 %v2095, %v2095
        %v2128 = vpack.c.b16 %v2096, %v2096
        %v2129 = vpack.c.b16 %v2097, %v2097
        %v2130 = vpack.c.b16 %v2098, %v2098
        %v2131 = vpack.c.b16 %v2099, %v2099
        %v2132 = vpack.c.b16 %v2100, %v2100
        %v2133 = vpack.c.b16 %v2101, %v2101
        %v2134 = vpack.c.b16 %v2102, %v2102
        %v2135 = vpack.c.b16 %v2103, %v2103
        %v2136 = vpack.c.b16 %v2104, %v2104
        %v2137 = vpack.c.b16 %v2105, %v2105
        %v2138 = vpack.c.b16 %v2106, %v2106
        %v2139 = vpack.c.b16 %v2107, %v2107
        %v2140 = vpack.c.b16 %v2108, %v2108
        %v2141 = vpack.c.b16 %v2109, %v2109
        %v2142 = vpack.c.b16 %v2110, %v2110
        %v2143 = vpack.c.b16 %v2111, %v2111
        %v2144 = vpack.c.b16 %v2112, %v2112
        %v2145 = vpack.c.b16 %v2113, %v2113
        %v2146 = vpack.c.b16 %v2114, %v2114
        %2179 = vst [vmem:[%s550] sm:$0xf] %v2115
        %2180 = vst [vmem:[%s550 + $0x4] sm:$0xf] %v2116
        %2181 = vst [vmem:[%s550 + $0x8] sm:$0xf] %v2117
        %2182 = vst [vmem:[%s550 + $0xc] sm:$0xf] %v2118
        %2183 = vst [vmem:[%s550 + $0x10] sm:$0xf] %v2119
        %2184 = vst [vmem:[%s550 + $0x14] sm:$0xf] %v2120
        %2185 = vst [vmem:[%s550 + $0x18] sm:$0xf] %v2121
        %2186 = vst [vmem:[%s550 + $0x1c] sm:$0xf] %v2122
        %2187 = vst [vmem:[%s550 + $0x20] sm:$0xf] %v2123
        %2188 = vst [vmem:[%s550 + $0x24] sm:$0xf] %v2124
        %2189 = vst [vmem:[%s550 + $0x28] sm:$0xf] %v2125
        %2190 = vst [vmem:[%s550 + $0x2c] sm:$0xf] %v2126
        %2191 = vst [vmem:[%s550 + $0x30] sm:$0xf] %v2127
        %2192 = vst [vmem:[%s550 + $0x34] sm:$0xf] %v2128
        %2193 = vst [vmem:[%s550 + $0x38] sm:$0xf] %v2129
        %2194 = vst [vmem:[%s550 + $0x3c] sm:$0xf] %v2130
        %2195 = vst [vmem:[%s550 + $0x40] sm:$0xf] %v2131
        %2196 = vst [vmem:[%s550 + $0x44] sm:$0xf] %v2132
        %2197 = vst [vmem:[%s550 + $0x48] sm:$0xf] %v2133
        %2198 = vst [vmem:[%s550 + $0x4c] sm:$0xf] %v2134
        %2199 = vst [vmem:[%s550 + $0x50] sm:$0xf] %v2135
        %2200 = vst [vmem:[%s550 + $0x54] sm:$0xf] %v2136
        %2201 = vst [vmem:[%s550 + $0x58] sm:$0xf] %v2137
        %2202 = vst [vmem:[%s550 + $0x5c] sm:$0xf] %v2138
        %2203 = vst [vmem:[%s550 + $0x60] sm:$0xf] %v2139
        %2204 = vst [vmem:[%s550 + $0x64] sm:$0xf] %v2140
        %2205 = vst [vmem:[%s550 + $0x68] sm:$0xf] %v2141
        %2206 = vst [vmem:[%s550 + $0x6c] sm:$0xf] %v2142
        %2207 = vst [vmem:[%s550 + $0x70] sm:$0xf] %v2143
        %2208 = vst [vmem:[%s550 + $0x74] sm:$0xf] %v2144
        %2209 = vst [vmem:[%s550 + $0x78] sm:$0xf] %v2145
        %2210 = vst [vmem:[%s550 + $0x7c] sm:$0xf] %v2146
        %s2211 = sand.u32 %s254, 1
        %s2212 = scalar_lea.sflag [#allocation4], %s2211
        %s2213 = sand.u32 %s254, 1
        %s2214 = smul.addr %s2213, 128
        %s2215 = scalar_lea.vmem [#allocation17], %s2214
        %s2216 = sand.u32 %s36, 1
        %s2217 = scalar_lea.sflag [#allocation19], %s2216
        %s2218 = sand.u32 %s282, 1
        %s2219 = smul.addr %s2218, 128
        %s2220 = scalar_lea.vmem [#allocation18], %s2219
        %s2221 = sand.u32 %s36, 1
        %s2222 = scalar_lea.sflag [#allocation19], %s2221
        %s2223 = sand.u32 %s310, 1
        %s2224 = smul.addr %s2223, 128
        %s2225 = scalar_lea.vmem [#allocation20], %s2224
        // Predicated region
        $region93: #{tpu_custom_call.1} parent=55 // pred_check
          %p2226 = pneg %p264
        $region94: #{tpu_custom_call.1} parent=55 // pred_check_branch
          %2228 = sbr.rel (%p2226) target = $region96
        $region95: #{tpu_custom_call.1} parent=55 // pred_region
          %s2229 = smul.u32 32, %s41
          %s2231 = ssub.s32 2048, 2048
          %2232 = vsyncadd %s2212, %s2231
          %s2233 = smul.addr %s40, 32
          %s2234 = sadd.s32 %s2229, %s2233
          %s2235 = smul.addr %s2234, 64
          %s2236 = scalar_lea.hbm %s9, %s2235
          %s2237 = sshll.u32 %s2215, 4
          %s2238 = int_to_ptr.vmem [resolvable:$true] %s2237
          %2243 = dma.vmem_to_hbm [thread:$0]  %s2238, 2048, %s2236, %s2212, 64, 64, 4
        $region96: #{tpu_custom_call.1} parent=55 // pred_fallthru
          _
        // Predicated region
        $region97: #{tpu_custom_call.1} parent=55 // pred_check
          %p2244 = pneg %p292
        $region98: #{tpu_custom_call.1} parent=55 // pred_check_branch
          %2246 = sbr.rel (%p2244) target = $region100
        $region99: #{tpu_custom_call.1} parent=55 // pred_region
          %s2247 = smul.u32 32, %s41
          %s2249 = ssub.s32 2048, 2048
          %2250 = vsyncadd %s2217, %s2249
          %s2251 = smul.addr %s40, 32
          %s2252 = sadd.s32 %s2247, %s2251
          %s2253 = smul.addr %s2252, 64
          %s2254 = scalar_lea.hbm %s10, %s2253
          %s2255 = sshll.u32 %s2220, 4
          %s2256 = int_to_ptr.vmem [resolvable:$true] %s2255
          %2261 = dma.vmem_to_hbm [thread:$0]  %s2256, 2048, %s2254, %s2217, 64, 64, 4
        $region100: #{tpu_custom_call.1} parent=55 // pred_fallthru
          _
        // Predicated region
        $region101: #{tpu_custom_call.1} parent=55 // pred_check
          %p2262 = pneg %p320
        $region102: #{tpu_custom_call.1} parent=55 // pred_check_branch
          %2264 = sbr.rel (%p2262) target = $region104
        $region103: #{tpu_custom_call.1} parent=55 // pred_region
          %s2265 = smul.u32 32, %s41
          %s2267 = ssub.s32 2048, 2048
          %2268 = vsyncadd %s2222, %s2267
          %s2269 = smul.addr %s40, 32
          %s2270 = sadd.s32 %s2265, %s2269
          %s2271 = smul.addr %s2270, 64
          %s2272 = scalar_lea.hbm %s11, %s2271
          %s2273 = sshll.u32 %s2225, 4
          %s2274 = int_to_ptr.vmem [resolvable:$true] %s2273
          %2279 = dma.vmem_to_hbm [thread:$0]  %s2274, 2048, %s2272, %s2222, 64, 64, 4
        $region104: #{tpu_custom_call.1} parent=55 // pred_fallthru
          _
      $region56: #{tpu_custom_call.1} parent=5 // pred_fallthru
        _
      %p2280 = scmp.le.s32.totalorder 2, %s31
      // Predicated region
      $region105: #{tpu_custom_call.1} parent=5 // pred_check
        %p2281 = pneg %p2280
      $region106: #{tpu_custom_call.1} parent=5 // pred_check_branch
        %2283 = sbr.rel (%p2281) target = $region108
      $region107: #{tpu_custom_call.1} parent=5 // pred_region
        %s2284 = ssub.s32 %s31, 2
        // Predicated region
        $region109: #{tpu_custom_call.1} parent=107 // pred_check
          %p2285 = pneg %p270
        $region110: #{tpu_custom_call.1} parent=107 // pred_check_branch
          %2287 = sbr.rel (%p2285) target = $region112
        $region111: #{tpu_custom_call.1} parent=107 // pred_region
          %s2288 = sand.u32 %s255, 1
          %s2289 = scalar_lea.sflag [#allocation4], %s2288
          %s2290 = sand.u32 %s255, 1
          %s2291 = smul.addr %s2290, 128
          %s2292 = scalar_lea.vmem [#allocation17], %s2291
          %2293 = dma.done %s2289, 2048
        $region112: #{tpu_custom_call.1} parent=107 // pred_fallthru
          _
        // Predicated region
        $region113: #{tpu_custom_call.1} parent=107 // pred_check
          %p2294 = pneg %p298
        $region114: #{tpu_custom_call.1} parent=107 // pred_check_branch
          %2296 = sbr.rel (%p2294) target = $region116
        $region115: #{tpu_custom_call.1} parent=107 // pred_region
          %s2297 = sand.u32 %s37, 1
          %s2298 = scalar_lea.sflag [#allocation19], %s2297
          %s2299 = sand.u32 %s283, 1
          %s2300 = smul.addr %s2299, 128
          %s2301 = scalar_lea.vmem [#allocation18], %s2300
          %2302 = dma.done %s2298, 2048
        $region116: #{tpu_custom_call.1} parent=107 // pred_fallthru
          _
        // Predicated region
        $region117: #{tpu_custom_call.1} parent=107 // pred_check
          %p2303 = pneg %p326
        $region118: #{tpu_custom_call.1} parent=107 // pred_check_branch
          %2305 = sbr.rel (%p2303) target = $region120
        $region119: #{tpu_custom_call.1} parent=107 // pred_region
          %s2306 = sand.u32 %s37, 1
          %s2307 = scalar_lea.sflag [#allocation19], %s2306
          %s2308 = sand.u32 %s311, 1
          %s2309 = smul.addr %s2308, 128
          %s2310 = scalar_lea.vmem [#allocation20], %s2309
          %2311 = dma.done %s2307, 2048
        $region120: #{tpu_custom_call.1} parent=107 // pred_fallthru
          _
      $region108: #{tpu_custom_call.1} parent=5 // pred_fallthru
        _
    $region6: #{tpu_custom_call.1} parent=1 // loop_footer
      %s35 = sadd.s32 1, %s31
    $region7: #{tpu_custom_call.1} parent=1 // loop_footer_branch
      %30 = sbr.rel target = $region3
    $region8: #{tpu_custom_call.1} parent=1 // loop_exit
      _
    %2312 = vsyncpa [#allocation3], 1
    %s2313 = scalar_lea.sflag [#allocation3], 1
    %2314 = vsyncpa %s2313, 1
    %2315 = vsyncpa [#allocation6], 1
    %2316 = vsyncpa [#allocation9], 1
    %2317 = vsyncpa [#allocation12], 1
    %2318 = vsyncpa [#allocation15], 1
    %2319 = vsyncpa [#allocation4], 1
    %s2320 = scalar_lea.sflag [#allocation4], 1
    %2321 = vsyncpa %s2320, 1
    %2322 = vsyncpa [#allocation19], 1
    %s2323 = scalar_lea.sflag [#allocation19], 1
    %2324 = vsyncpa %s2323, 1

</llo_original>
